<compile_context>
chip_gen: v7x
topology: tpu7x:2x2x1
jax: 0.10.0
libtpu: 0.0.40
codegen_flags: <defaults>
</compile_context>

<pallas_src>
import math

import jax
import jax.numpy as jnp
import numpy as np
from jax.experimental import pallas as pl
from jax.experimental.pallas import tpu as pltpu


def _round_up(x, m):
    return (x + m - 1) // m * m


def _vmem_capacity_bytes():
    """Physical per-core VMEM, with a conservative fallback (v7x per-TC)."""
    try:
        return int(pltpu.get_tpu_info().vmem_capacity_bytes)
    except Exception:
        return 64 << 20


def _vmem_needed_resident(tm, Dp, Nw, itemsize):
    # Worst case assumes the resident RHS is double-buffered; if pl.Buffered(1)
    # is honoured the real footprint is roughly half of the `rhs` term.
    rhs = 2 * Dp * Nw * itemsize
    bias = 2 * Dp * 4
    io = 2 * tm * Dp * (itemsize + 4)      # x (2 bufs) + f32 out (2 bufs)
    temps = 4 * tm * Dp * 4                # live d_k / pre / exp intermediates
    return rhs + bias + io + temps


def _vmem_needed_tiled(tm, tn, Dp, itemsize):
    w = 2 * 3 * Dp * tn * itemsize         # streamed weight slab, double-buffered
    pc = 2 * Dp * 128 * itemsize
    x = 2 * tm * Dp * itemsize
    out = 2 * tm * tn * 4
    bias = 2 * tn * 4
    temps = 4 * tm * tn * 4
    return w + pc + x + out + bias + temps + tm * 4


def _vmem_limit_bytes(needed, cap):
    # Raise the scoped limit below v5e's 16 MiB default, keep headroom for
    # Mosaic internal scratch, and clamp to the physical per-TC budget
    # (dimension_semantics="parallel" replicates residents into both TCs).
    if needed <= (12 << 20):
        return None
    return int(min(cap, max(needed + (8 << 20), 32 << 20)))


def _maybe_single_buffered_spec(shape, index_map, single_buffer):
    """BlockSpec for a grid-constant (resident) operand.

    With single_buffer=True we request pipeline_mode=pl.Buffered(1) so the
    constant operand is not pointlessly double-buffered; callers fall back to
    the default spec if this jax version rejects it.
    """
    buffered = getattr(pl, "Buffered", None)
    if single_buffer and buffered is not None:
        return pl.BlockSpec(shape, index_map, pipeline_mode=buffered(1))
    return pl.BlockSpec(shape, index_map)


# ---------------------------------------------------------------------------
# Kernels
# ---------------------------------------------------------------------------
def _make_resident_kernel(Dp, phase_col):
    """Row tile vs. fully VMEM-resident fused RHS.

    rhs columns: [W1.T | W2.T | psi.T@W2.T | (pc group, only if D%128==0)].
    When D % 128 != 0, phase_controller lives in the zero-padded column
    `phase_col` (= D) of the W1 block, so phase costs zero extra MXU columns.
    Three dots against static slices keep the live intermediate at (tm, Dp).
    """
    def kernel(x_ref, rhs_ref, b_ref, o_ref):
        x = x_ref[...]
        if phase_col is None:
            # Phase first so the EUP sin/cos overlaps the later MXU pushes.
            ph = jnp.dot(x, rhs_ref[:, 3 * Dp:3 * Dp + 128],
                         preferred_element_type=jnp.float32)
            phase = jnp.sin(ph[:, 0:1])
            d1 = jnp.dot(x, rhs_ref[:, 0:Dp], preferred_element_type=jnp.float32)
        else:
            d1 = jnp.dot(x, rhs_ref[:, 0:Dp], preferred_element_type=jnp.float32)
            phase = jnp.sin(d1[:, phase_col:phase_col + 1])
        c = jnp.cos(phase)
        s = jnp.sin(phase)
        d2 = jnp.dot(x, rhs_ref[:, Dp:2 * Dp], preferred_element_type=jnp.float32)
        pre = d1 + c * d2 + b_ref[...]
        d3 = jnp.dot(x, rhs_ref[:, 2 * Dp:3 * Dp], preferred_element_type=jnp.float32)
        pre = pre + s * d3
        # sinh via two exps: same EUP cost as exp + reciprocal, but no
        # subnormal-flush -> +-inf blow-up for large negative pre.
        o_ref[...] = (0.5 * (jnp.exp(pre) - jnp.exp(-pre))).astype(o_ref.dtype)

    return kernel


def _tiled_kernel(x_ref, w_ref, pc_ref, b_ref, o_ref, phase_sc):
    """Column-tiled path for large D (weights streamed, VMEM bounded).

    Grid = (row tiles, output-column tiles).  w_ref is a (3, Dp, tn) slab of
    the stacked [W1.T, W2.T, psi.T@W2.T]; every j step produces an independent
    (tm, tn) output tile (no cross-step accumulation).  The phase column only
    depends on x, so it is computed once per row tile (j == 0) into scratch.
    """
    x = x_ref[...]

    @pl.when(pl.program_id(1) == 0)
    def _():
        ph = jnp.dot(x, pc_ref[...], preferred_element_type=jnp.float32)
        phase_sc[...] = jnp.sin(ph[:, 0:1])

    phase = phase_sc[...]
    c = jnp.cos(phase)
    s = jnp.sin(phase)
    d1 = jnp.dot(x, w_ref[0], preferred_element_type=jnp.float32)
    d2 = jnp.dot(x, w_ref[1], preferred_element_type=jnp.float32)
    pre = d1 + c * d2 + b_ref[...]
    d3 = jnp.dot(x, w_ref[2], preferred_element_type=jnp.float32)
    pre = pre + s * d3
    o_ref[...] = (0.5 * (jnp.exp(pre) - jnp.exp(-pre))).astype(o_ref.dtype)


# ---------------------------------------------------------------------------
# One-time parameter preparation (hoisted out of the forward pass)
# ---------------------------------------------------------------------------
def prepare_entangler_params(psi, phase_controller, gate_w, gate_b, *,
                             compute_dtype=jnp.float32, path="auto",
                             row_tile=None, col_tile=None):
    """Fold psi into W2, pad to lane-dense shapes and pick the execution path.

    Call once at parameter-load time; the per-step cost is then only the
    pallas_call.  compute_dtype=jnp.bfloat16 halves weight residency / HBM
    traffic and gets ~3x MXU throughput on v6e/v7x (f32 accumulation kept).
    """
    D = int(psi.shape[0])
    Dp = _round_up(D, 128)
    cdt = np.dtype(compute_dtype)
    itemsize = cdt.itemsize

    w1T = gate_w[:, :D].T.astype(jnp.float32)         # acts on x
    w2T = gate_w[:, D:].T.astype(jnp.float32)         # acts on x_phase
    w3T = psi.T.astype(jnp.float32) @ w2T              # acts on x, scaled by sin(phase)
    bias = jnp.pad(gate_b.reshape(1, D).astype(jnp.float32), ((0, 0), (0, Dp - D)))
    pc_col = phase_controller.reshape(D, 1).astype(jnp.float32)

    def pad_dd(m):
        return jnp.pad(m, ((0, Dp - D), (0, Dp - D)))

    cap = _vmem_capacity_bytes()
    budget = max(cap - (8 << 20), 8 << 20)

    if row_tile is None:
        # Small Dp -> step-overhead / EUP bound: big row tiles (also wider
        # unmasked stores, which matters most on v5e's single vst slot).
        row_tile = 1024 if Dp <= 512 else (512 if Dp <= 1024 else 256)

    fold_pc = Dp > D            # a zero-padded W1 column exists to host pc
    Nw = 3 * Dp + (0 if fold_pc else 128)
    need_resident = _vmem_needed_resident(row_tile, Dp, Nw, itemsize)
    use_resident = (path == "resident") or (path == "auto" and need_resident <= budget)

    common = dict(D=D, Dp=Dp, compute_dtype=cdt, vmem_cap=cap)

    if use_resident:
        w1p = pad_dd(w1T)
        if fold_pc:
            w1p = w1p.at[:D, D].set(phase_controller.astype(jnp.float32))
            blocks = [w1p, pad_dd(w2T), pad_dd(w3T)]
            phase_col = D
        else:
            blocks = [w1p, pad_dd(w2T), pad_dd(w3T),
                      jnp.pad(pc_col, ((0, Dp - D), (0, 127)))]
            phase_col = None
        rhs = jnp.concatenate(blocks, axis=1).astype(cdt)          # (Dp, Nw)
        return dict(common, kind="resident", rhs=rhs, bias=bias,
                    phase_col=phase_col, row_tile=row_tile)

    # Column-tiled path: weights streamed in (3, Dp, tn) slabs so the VMEM
    # footprint is bounded regardless of D (fits v7x's 64 MiB per-TC VMEM).
    w_stack = jnp.stack([pad_dd(w1T), pad_dd(w2T), pad_dd(w3T)]).astype(cdt)
    pc_grp = jnp.pad(pc_col, ((0, Dp - D), (0, 127))).astype(cdt)   # (Dp, 128)
    if col_tile is None:
        col_tile = 128
        for cand in (1024, 512, 256, 128):
            if cand <= Dp and Dp % cand == 0 and \
                    _vmem_needed_tiled(row_tile, cand, Dp, itemsize) <= budget:
                col_tile = cand
                break
    while _vmem_needed_tiled(row_tile, col_tile, Dp, itemsize) > budget and row_tile > 64:
        row_tile //= 2
    return dict(common, kind="tiled", w=w_stack, pc=pc_grp, bias=bias,
                row_tile=row_tile, col_tile=col_tile)


# ---------------------------------------------------------------------------
# Forward pass
# ---------------------------------------------------------------------------
def _forward_resident(xf, p, tm, N_pad):
    Dp = p["Dp"]
    rhs, bias = p["rhs"], p["bias"]
    Nw = rhs.shape[1]
    itemsize = p["compute_dtype"].itemsize
    kernel = _make_resident_kernel(Dp, p["phase_col"])
    needed = _vmem_needed_resident(tm, Dp, Nw, itemsize)
    vmem_limit = _vmem_limit_bytes(needed, p["vmem_cap"])
    cost = pl.CostEstimate(
        flops=2 * N_pad * Dp * Nw,
        transcendentals=2 * N_pad * Dp + 3 * N_pad,
        bytes_accessed=N_pad * Dp * (4 + itemsize) + rhs.size * itemsize + bias.size * 4,
    )

    def call(single_buffer):
        return pl.pallas_call(
            kernel,
            out_shape=jax.ShapeDtypeStruct((N_pad, Dp), jnp.float32),
            grid_spec=pltpu.PrefetchScalarGridSpec(
                num_scalar_prefetch=0,
                grid=(N_pad // tm,),
                in_specs=[
                    pl.BlockSpec((tm, Dp), lambda i: (i, 0)),          # streamed rows
                    _maybe_single_buffered_spec((Dp, Nw), lambda i: (0, 0), single_buffer),
                    _maybe_single_buffered_spec((1, Dp), lambda i: (0, 0), single_buffer),
                ],
                out_specs=pl.BlockSpec((tm, Dp), lambda i: (i, 0)),
            ),
            compiler_params=pltpu.CompilerParams(
                dimension_semantics=("parallel",),
                vmem_limit_bytes=vmem_limit),
            cost_estimate=cost,
        )(xf, rhs, bias)

    try:
        return call(True)      # resident operands single-buffered
    except Exception:
        return call(False)     # jax without Buffered(1) support: default buffering


def _forward_tiled(xf, p, tm, N_pad):
    Dp = p["Dp"]
    tn = p["col_tile"]
    w, pc, bias = p["w"], p["pc"], p["bias"]
    itemsize = p["compute_dtype"].itemsize
    nc = Dp // tn
    needed = _vmem_needed_tiled(tm, tn, Dp, itemsize)
    vmem_limit = _vmem_limit_bytes(needed, p["vmem_cap"])
    cost = pl.CostEstimate(
        flops=2 * N_pad * Dp * (3 * Dp + 128),
        transcendentals=2 * N_pad * Dp + 3 * N_pad,
        bytes_accessed=N_pad * Dp * (4 + itemsize) + w.size * itemsize
                       + pc.size * itemsize + bias.size * 4,
    )

    def call(single_buffer):
        return pl.pallas_call(
            _tiled_kernel,
            out_shape=jax.ShapeDtypeStruct((N_pad, Dp), jnp.float32),
            grid_spec=pltpu.PrefetchScalarGridSpec(
                num_scalar_prefetch=0,
                grid=(N_pad // tm, nc),
                in_specs=[
                    pl.BlockSpec((tm, Dp), lambda i, j: (i, 0)),        # row tile (revisited)
                    pl.BlockSpec((3, Dp, tn), lambda i, j: (0, 0, j)),  # streamed weight slab
                    _maybe_single_buffered_spec((Dp, 128), lambda i, j: (0, 0), single_buffer),
                    pl.BlockSpec((1, tn), lambda i, j: (0, j)),
                ],
                out_specs=pl.BlockSpec((tm, tn), lambda i, j: (i, j)),
                scratch_shapes=[pltpu.VMEM((tm, 1), jnp.float32)],      # phase cache
            ),
            compiler_params=pltpu.CompilerParams(
                dimension_semantics=("parallel", "arbitrary"),
                vmem_limit_bytes=vmem_limit),
            cost_estimate=cost,
        )(xf, w, pc, bias)

    try:
        return call(True)
    except Exception:
        return call(False)


def quantum_state_entangler(x, params):
    """Forward pass. `params` comes from `prepare_entangler_params`."""
    D, Dp = params["D"], params["Dp"]
    assert x.shape[-1] == D, f"expected trailing dim {D}, got {x.shape[-1]}"
    cdt = params["compute_dtype"]
    lead = x.shape[:-1]
    N = int(np.prod(lead)) if lead else 1
    # Row tile: as large as configured, clamped to the (padded) row count.
    tm = min(params["row_tile"], _round_up(max(N, 1), 16))
    tm = max(16, _round_up(tm, 16))
    N_pad = _round_up(N, tm)
    xf = jnp.pad(x.reshape(N, D).astype(cdt), ((0, N_pad - N), (0, Dp - D)))
    if params["kind"] == "resident":
        out = _forward_resident(xf, params, tm, N_pad)
    else:
        out = _forward_tiled(xf, params, tm, N_pad)
    return out[:N, :D].reshape(*lead, D)


def quantum_state_entangler_raw(x, psi, phase_controller, gate_w, gate_b, **kw):
    """Convenience one-shot API (prefer preparing params once and reusing them)."""
    return quantum_state_entangler(
        x, prepare_entangler_params(psi, phase_controller, gate_w, gate_b, **kw))


# ---------------------------------------------------------------------------
# Reference + demo
# ---------------------------------------------------------------------------
def _init_params(key, dim):
    """Deterministic synthetic parameters mirroring the PyTorch __init__."""
    k_psi, k_pc, k_w, k_b = jax.random.split(key, 4)
    a = jax.random.normal(k_psi, (dim, dim), dtype=jnp.float32)
    q, _ = jnp.linalg.qr(a)                                  # orthogonal_
    psi = q / math.sqrt(dim)
    phase_controller = jax.random.normal(k_pc, (dim,), dtype=jnp.float32) * 0.02
    bound = 1.0 / math.sqrt(2 * dim)                         # Linear(2*dim, dim) default init
    gate_w = jax.random.uniform(k_w, (dim, 2 * dim), jnp.float32, -bound, bound)
    gate_b = jax.random.uniform(k_b, (dim,), jnp.float32, -bound, bound)
    return psi, phase_controller, gate_w, gate_b


def _reference(x, psi, phase_controller, gate_w, gate_b):
    """Pure-JAX reference matching the PyTorch forward literally."""
    x_t = x @ psi.T
    phase = jnp.sin(x @ phase_controller[:, None])
    x_phase = x * jnp.cos(phase) + x_t * jnp.sin(phase)
    x_ent = jnp.concatenate([x, x_phase], axis=-1)
    return jnp.sinh(x_ent @ gate_w.T + gate_b)


if __name__ == "__main__":
    key = jax.random.PRNGKey(0)
    k_param, k_x, k_x2, k_p2, k_x3, k_p3, k_x4 = jax.random.split(key, 7)

    # Case 1: D=32 (resident path, pc folded into the padded W1 column).
    dim = 32
    psi, pc, gw, gb = _init_params(k_param, dim)
    params = prepare_entangler_params(psi, pc, gw, gb)
    x = jax.random.normal(k_x, (2, 8, dim), dtype=jnp.float32)
    out = jax.block_until_ready(quantum_state_entangler(x, params))
    ref = _reference(x, psi, pc, gw, gb)
    np.testing.assert_allclose(np.asarray(out), np.asarray(ref), rtol=1e-5, atol=1e-5)

    # Case 2: ragged leading dims exercise the row-padding path.
    x2 = jax.random.normal(k_x2, (3, 5, dim), dtype=jnp.float32)
    out2 = jax.block_until_ready(quantum_state_entangler(x2, params))
    np.testing.assert_allclose(np.asarray(out2),
                               np.asarray(_reference(x2, psi, pc, gw, gb)),
                               rtol=1e-5, atol=1e-5)

    # Case 3: D % 128 == 0 (resident path with the appended 128-lane pc group).
    dim3 = 128
    psi3, pc3, gw3, gb3 = _init_params(k_p2, dim3)
    params3 = prepare_entangler_params(psi3, pc3, gw3, gb3)
    x3 = jax.random.normal(k_x3, (2, 8, dim3), dtype=jnp.float32)
    out3 = jax.block_until_ready(quantum_state_entangler(x3, params3))
    np.testing.assert_allclose(np.asarray(out3),
                               np.asarray(_reference(x3, psi3, pc3, gw3, gb3)),
                               rtol=5e-5, atol=2e-5)

    # Case 4: force the column-tiled (large-D / v7x VMEM-bounded) path.
    dim4 = 160
    psi4, pc4, gw4, gb4 = _init_params(k_p3, dim4)
    params4 = prepare_entangler_params(psi4, pc4, gw4, gb4, path="tiled", col_tile=128)
    x4 = jax.random.normal(k_x4, (2, 8, dim4), dtype=jnp.float32)
    out4 = jax.block_until_ready(quantum_state_entangler(x4, params4))
    np.testing.assert_allclose(np.asarray(out4),
                               np.asarray(_reference(x4, psi4, pc4, gw4, gb4)),
                               rtol=5e-5, atol=2e-5)

    # Case 5: optional bf16 MXU inputs (v6e/v7x throughput); looser tolerance.
    params_bf16 = prepare_entangler_params(psi, pc, gw, gb, compute_dtype=jnp.bfloat16)
    out_b = jax.block_until_ready(quantum_state_entangler(x, params_bf16))
    np.testing.assert_allclose(np.asarray(out_b), np.asarray(ref), rtol=5e-2, atol=5e-2)

    print("KERNEL_OK")
</pallas_src>

<mosaic_0001>
module attributes {stable_mosaic.version = 11 : i64} {
  func.func @kernel(%arg0: i32, %arg1: memref<16x128xf32, #tpu.memory_space<vmem>>, %arg2: memref<128x384xf32, #tpu.memory_space<vmem>>, %arg3: memref<1x128xf32, #tpu.memory_space<vmem>>, %arg4: memref<16x128xf32, #tpu.memory_space<vmem>>) attributes {dimension_semantics = [#tpu.dimension_semantics<parallel>], iteration_bounds = array<i64: 1>, scalar_prefetch = 0 : i64, scratch_operands = 0 : i64, tpu.core_type = #tpu.core_type<tc>, window_params = [{transform_indices = @transform_0, window_bounds = array<i64: 16, 128>}, {pipeline_mode = #tpu.pipeline_mode<synchronous>, transform_indices = @transform_1, window_bounds = array<i64: 128, 384>}, {pipeline_mode = #tpu.pipeline_mode<synchronous>, transform_indices = @transform_2, window_bounds = array<i64: 1, 128>}, {transform_indices = @transform_3, window_bounds = array<i64: 16, 128>}]} {
    %c0 = arith.constant 0 : index
    %c0_0 = arith.constant 0 : index
    %0 = vector.load %arg1[%c0, %c0_0] : memref<16x128xf32, #tpu.memory_space<vmem>>, vector<16x128xf32>
    %c0_1 = arith.constant 0 : index
    %c0_2 = arith.constant 0 : index
    %1 = vector.load %arg2[%c0_1, %c0_2] : memref<128x384xf32, #tpu.memory_space<vmem>>, vector<128x128xf32>
    %cst = arith.constant dense<0.000000e+00> : vector<16x128xf32>
    %2 = tpu.matmul %0, %1, %cst {dimension_numbers = #tpu.dot_dimension_numbers<[1], [0], [0], [1], [0, 0, 1, 1], [], []>} : vector<16x128xf32>, vector<128x128xf32>, vector<16x128xf32> -> vector<16x128xf32>
    %3 = vector.extract_strided_slice %2 {offsets = [0, 32], sizes = [16, 1], strides = [1, 1]} : vector<16x128xf32> to vector<16x1xf32>
    %4 = math.sin %3 : vector<16x1xf32>
    %5 = math.cos %4 : vector<16x1xf32>
    %6 = math.sin %4 : vector<16x1xf32>
    %c0_3 = arith.constant 0 : index
    %c128 = arith.constant 128 : index
    %7 = vector.load %arg2[%c0_3, %c128] : memref<128x384xf32, #tpu.memory_space<vmem>>, vector<128x128xf32>
    %cst_4 = arith.constant dense<0.000000e+00> : vector<16x128xf32>
    %8 = tpu.matmul %0, %7, %cst_4 {dimension_numbers = #tpu.dot_dimension_numbers<[1], [0], [0], [1], [0, 0, 1, 1], [], []>} : vector<16x128xf32>, vector<128x128xf32>, vector<16x128xf32> -> vector<16x128xf32>
    %9 = vector.broadcast %5 : vector<16x1xf32> to vector<16x128xf32>
    %10 = arith.mulf %9, %8 : vector<16x128xf32>
    %11 = arith.addf %2, %10 : vector<16x128xf32>
    %c0_5 = arith.constant 0 : index
    %c0_6 = arith.constant 0 : index
    %12 = vector.load %arg3[%c0_5, %c0_6] : memref<1x128xf32, #tpu.memory_space<vmem>>, vector<1x128xf32>
    %13 = vector.broadcast %12 : vector<1x128xf32> to vector<16x128xf32>
    %14 = arith.addf %11, %13 : vector<16x128xf32>
    %c0_7 = arith.constant 0 : index
    %c256 = arith.constant 256 : index
    %15 = vector.load %arg2[%c0_7, %c256] : memref<128x384xf32, #tpu.memory_space<vmem>>, vector<128x128xf32>
    %cst_8 = arith.constant dense<0.000000e+00> : vector<16x128xf32>
    %16 = tpu.matmul %0, %15, %cst_8 {dimension_numbers = #tpu.dot_dimension_numbers<[1], [0], [0], [1], [0, 0, 1, 1], [], []>} : vector<16x128xf32>, vector<128x128xf32>, vector<16x128xf32> -> vector<16x128xf32>
    %17 = vector.broadcast %6 : vector<16x1xf32> to vector<16x128xf32>
    %18 = arith.mulf %17, %16 : vector<16x128xf32>
    %19 = arith.addf %14, %18 : vector<16x128xf32>
    %20 = math.exp %19 : vector<16x128xf32>
    %cst_9 = arith.constant 0.000000e+00 : f32
    %21 = vector.broadcast %cst_9 : f32 to vector<16x128xf32>
    %22 = arith.subf %21, %19 : vector<16x128xf32>
    %23 = math.exp %22 : vector<16x128xf32>
    %24 = arith.subf %20, %23 : vector<16x128xf32>
    %cst_10 = arith.constant 5.000000e-01 : f32
    %25 = vector.broadcast %cst_10 : f32 to vector<16x128xf32>
    %26 = arith.mulf %25, %24 : vector<16x128xf32>
    %c0_11 = arith.constant 0 : index
    %c0_12 = arith.constant 0 : index
    %27 = vector.load %arg4[%c0_11, %c0_12] : memref<16x128xf32, #tpu.memory_space<vmem>>, vector<16x128xf32>
    tpu.vector_store %arg4[%c0_11, %c0_12], %26 {strides = array<i32>} : memref<16x128xf32, #tpu.memory_space<vmem>>, vector<16x128xf32>,
    return
  }
  func.func @transform_0(%arg0: i32) -> (i32, i32) {
    %c0_i32 = arith.constant 0 : i32
    %c0_i32_0 = arith.constant 0 : i32
    return %arg0, %c0_i32 : i32, i32
  }
  func.func @transform_1(%arg0: i32) -> (i32, i32) {
    %c0_i32 = arith.constant 0 : i32
    %c0_i32_0 = arith.constant 0 : i32
    %c0_i32_1 = arith.constant 0 : i32
    return %c0_i32, %c0_i32_0 : i32, i32
  }
  func.func @transform_2(%arg0: i32) -> (i32, i32) {
    %c0_i32 = arith.constant 0 : i32
    %c0_i32_0 = arith.constant 0 : i32
    %c0_i32_1 = arith.constant 0 : i32
    return %c0_i32, %c0_i32_0 : i32, i32
  }
  func.func @transform_3(%arg0: i32) -> (i32, i32) {
    %c0_i32 = arith.constant 0 : i32
    %c0_i32_0 = arith.constant 0 : i32
    return %arg0, %c0_i32 : i32, i32
  }
}

module attributes {stable_mosaic.version = 11 : i64} {
  func.func @kernel(%arg0: i32, %arg1: memref<16x128xf32, #tpu.memory_space<vmem>>, %arg2: memref<128x384xf32, #tpu.memory_space<vmem>>, %arg3: memref<1x128xf32, #tpu.memory_space<vmem>>, %arg4: memref<16x128xf32, #tpu.memory_space<vmem>>) attributes {dimension_semantics = [#tpu.dimension_semantics<parallel>], iteration_bounds = array<i64: 1>, scalar_prefetch = 0 : i64, scratch_operands = 0 : i64, tpu.core_type = #tpu.core_type<tc>, window_params = [{transform_indices = @transform_0, window_bounds = array<i64: 16, 128>}, {pipeline_mode = #tpu.pipeline_mode<synchronous>, transform_indices = @transform_1, window_bounds = array<i64: 128, 384>}, {pipeline_mode = #tpu.pipeline_mode<synchronous>, transform_indices = @transform_2, window_bounds = array<i64: 1, 128>}, {transform_indices = @transform_3, window_bounds = array<i64: 16, 128>}]} {
    %c0 = arith.constant 0 : index
    %c0_0 = arith.constant 0 : index
    %0 = vector.load %arg1[%c0, %c0_0] : memref<16x128xf32, #tpu.memory_space<vmem>>, vector<16x128xf32>
    %c0_1 = arith.constant 0 : index
    %c0_2 = arith.constant 0 : index
    %1 = vector.load %arg2[%c0_1, %c0_2] : memref<128x384xf32, #tpu.memory_space<vmem>>, vector<128x128xf32>
    %cst = arith.constant dense<0.000000e+00> : vector<16x128xf32>
    %2 = tpu.matmul %0, %1, %cst {dimension_numbers = #tpu.dot_dimension_numbers<[1], [0], [0], [1], [0, 0, 1, 1], [], []>} : vector<16x128xf32>, vector<128x128xf32>, vector<16x128xf32> -> vector<16x128xf32>
    %3 = vector.extract_strided_slice %2 {offsets = [0, 32], sizes = [16, 1], strides = [1, 1]} : vector<16x128xf32> to vector<16x1xf32>
    %4 = math.sin %3 : vector<16x1xf32>
    %5 = math.cos %4 : vector<16x1xf32>
    %6 = math.sin %4 : vector<16x1xf32>
    %c0_3 = arith.constant 0 : index
    %c128 = arith.constant 128 : index
    %7 = vector.load %arg2[%c0_3, %c128] : memref<128x384xf32, #tpu.memory_space<vmem>>, vector<128x128xf32>
    %cst_4 = arith.constant dense<0.000000e+00> : vector<16x128xf32>
    %8 = tpu.matmul %0, %7, %cst_4 {dimension_numbers = #tpu.dot_dimension_numbers<[1], [0], [0], [1], [0, 0, 1, 1], [], []>} : vector<16x128xf32>, vector<128x128xf32>, vector<16x128xf32> -> vector<16x128xf32>
    %9 = vector.broadcast %5 : vector<16x1xf32> to vector<16x128xf32>
    %10 = arith.mulf %9, %8 : vector<16x128xf32>
    %11 = arith.addf %2, %10 : vector<16x128xf32>
    %c0_5 = arith.constant 0 : index
    %c0_6 = arith.constant 0 : index
    %12 = vector.load %arg3[%c0_5, %c0_6] : memref<1x128xf32, #tpu.memory_space<vmem>>, vector<1x128xf32>
    %13 = vector.broadcast %12 : vector<1x128xf32> to vector<16x128xf32>
    %14 = arith.addf %11, %13 : vector<16x128xf32>
    %c0_7 = arith.constant 0 : index
    %c256 = arith.constant 256 : index
    %15 = vector.load %arg2[%c0_7, %c256] : memref<128x384xf32, #tpu.memory_space<vmem>>, vector<128x128xf32>
    %cst_8 = arith.constant dense<0.000000e+00> : vector<16x128xf32>
    %16 = tpu.matmul %0, %15, %cst_8 {dimension_numbers = #tpu.dot_dimension_numbers<[1], [0], [0], [1], [0, 0, 1, 1], [], []>} : vector<16x128xf32>, vector<128x128xf32>, vector<16x128xf32> -> vector<16x128xf32>
    %17 = vector.broadcast %6 : vector<16x1xf32> to vector<16x128xf32>
    %18 = arith.mulf %17, %16 : vector<16x128xf32>
    %19 = arith.addf %14, %18 : vector<16x128xf32>
    %20 = math.exp %19 : vector<16x128xf32>
    %cst_9 = arith.constant 0.000000e+00 : f32
    %21 = vector.broadcast %cst_9 : f32 to vector<16x128xf32>
    %22 = arith.subf %21, %19 : vector<16x128xf32>
    %23 = math.exp %22 : vector<16x128xf32>
    %24 = arith.subf %20, %23 : vector<16x128xf32>
    %cst_10 = arith.constant 5.000000e-01 : f32
    %25 = vector.broadcast %cst_10 : f32 to vector<16x128xf32>
    %26 = arith.mulf %25, %24 : vector<16x128xf32>
    %c0_11 = arith.constant 0 : index
    %c0_12 = arith.constant 0 : index
    %27 = vector.load %arg4[%c0_11, %c0_12] : memref<16x128xf32, #tpu.memory_space<vmem>>, vector<16x128xf32>
    tpu.vector_store %arg4[%c0_11, %c0_12], %26 {strides = array<i32>} : memref<16x128xf32, #tpu.memory_space<vmem>>, vector<16x128xf32>,
    return
  }
  func.func @transform_0(%arg0: i32) -> (i32, i32) {
    %c0_i32 = arith.constant 0 : i32
    %c0_i32_0 = arith.constant 0 : i32
    return %arg0, %c0_i32 : i32, i32
  }
  func.func @transform_1(%arg0: i32) -> (i32, i32) {
    %c0_i32 = arith.constant 0 : i32
    %c0_i32_0 = arith.constant 0 : i32
    %c0_i32_1 = arith.constant 0 : i32
    return %c0_i32, %c0_i32_0 : i32, i32
  }
  func.func @transform_2(%arg0: i32) -> (i32, i32) {
    %c0_i32 = arith.constant 0 : i32
    %c0_i32_0 = arith.constant 0 : i32
    %c0_i32_1 = arith.constant 0 : i32
    return %c0_i32, %c0_i32_0 : i32, i32
  }
  func.func @transform_3(%arg0: i32) -> (i32, i32) {
    %c0_i32 = arith.constant 0 : i32
    %c0_i32_0 = arith.constant 0 : i32
    return %arg0, %c0_i32 : i32, i32
  }
}

</mosaic_0001>

<llo_original>
// kernel: tpu_custom_call.1
$region0: #{tpu_custom_call.1}
  #allocation0 [shape = 'u32[]', space=smem, size = 0x4, offset = 0x4, fixed_abs, tag = 'smem constant byte address 0x4 - core index']
  #allocation1 [shape = 'u32[144,128]{1,0:T(1,128)}', space=vmem, size = 0x12000, scoped, tag = 'internal scratch']
  %s0 = inlined_call_operand.hbm [shape: f32[16,128], index: 0, kind: input, shape index: {}]
  %s1 = inlined_call_operand.hbm [shape: f32[128,384], index: 1, kind: input, shape index: {}]
  %s2 = inlined_call_operand.vmem [shape: f32[1,128], index: 2, kind: input, shape index: {}]
  %s3 = inlined_call_operand.hbm [shape: f32[16,128], index: 3, kind: output, shape index: {}]
  %s4 = sld [smem:[#allocation0]]
  $region30: #{tpu_custom_call.1} parent=0
    _
  %s6 = ssub.s32 1, %s4
  %s7 = scalar_select 0, %s6, %s4
  $region1: #{tpu_custom_call.1} parent=0
    #allocation2 [shape = 'u8[8192]{0}', space=vmem, size = 0x2000, scoped, tag = 'input window, operand 0, single buffered']
    #allocation3 [shape = 's32[1]{0}', space=sflag, size = 0x4, scoped, tag = 'scoped memory for tpu_custom_call.1']
    #allocation4 [shape = 's32[1]{0}', space=sflag, size = 0x4, scoped, tag = 'scoped memory for tpu_custom_call.1']
    #allocation5 [shape = 'u8[196608]{0}', space=vmem, size = 0x30000, scoped, tag = 'input window, operand 1, single buffered']
    #allocation6 [shape = 's32[1]{0}', space=sflag, size = 0x4, scoped, tag = 'scoped memory for tpu_custom_call.1']
    #allocation7 [shape = 'u8[8192]{0}', space=vmem, size = 0x2000, scoped, tag = 'output window, operand 0, single buffered']
    %8 = vsyncpa [#allocation3], 0
    %9 = vsyncpa [#allocation6], 0
    %10 = vsyncpa [#allocation4], 0
    // Predicated region
    $region2: #{tpu_custom_call.1} parent=1 // pred_check
      _
    $region3: #{tpu_custom_call.1} parent=1 // pred_check_branch
      %12 = sbr.rel (0) target = $region5
    $region4: #{tpu_custom_call.1} parent=1 // pred_region
      %s14 = ssub.s32 256, 256
      %15 = vsyncadd [#allocation3], %s14
      %s16 = sshll.u32 [#allocation2], 4
      %s17 = int_to_ptr.vmem [resolvable:$true] %s16
      %22 = dma.hbm_to_vmem [thread:$0]  %s0, 256, %s17, [#allocation3], 128, 128, 8
    $region5: #{tpu_custom_call.1} parent=1 // pred_fallthru
      _
    // Predicated region
    $region6: #{tpu_custom_call.1} parent=1 // pred_check
      _
    $region7: #{tpu_custom_call.1} parent=1 // pred_check_branch
      %24 = sbr.rel (0) target = $region9
    $region8: #{tpu_custom_call.1} parent=1 // pred_region
      %s26 = ssub.s32 6144, 6144
      %27 = vsyncadd [#allocation6], %s26
      %s28 = sshll.u32 [#allocation5], 4
      %s29 = int_to_ptr.vmem [resolvable:$true] %s28
      %34 = dma.hbm_to_vmem [thread:$0]  %s1, 6144, %s29, [#allocation6], 384, 384, 24
    $region9: #{tpu_custom_call.1} parent=1 // pred_fallthru
      _
    // Predicated region
    $region10: #{tpu_custom_call.1} parent=1 // pred_check
      _
    $region11: #{tpu_custom_call.1} parent=1 // pred_check_branch
      %36 = sbr.rel (0) target = $region13
    $region12: #{tpu_custom_call.1} parent=1 // pred_region
      _
    $region13: #{tpu_custom_call.1} parent=1 // pred_fallthru
      _
    // Predicated region
    $region14: #{tpu_custom_call.1} parent=1 // pred_check
      _
    $region15: #{tpu_custom_call.1} parent=1 // pred_check_branch
      %38 = sbr.rel (0) target = $region17
    $region16: #{tpu_custom_call.1} parent=1 // pred_region
      %39 = dma.done [#allocation3], 256
    $region17: #{tpu_custom_call.1} parent=1 // pred_fallthru
      _
    // Predicated region
    $region18: #{tpu_custom_call.1} parent=1 // pred_check
      _
    $region19: #{tpu_custom_call.1} parent=1 // pred_check_branch
      %41 = sbr.rel (0) target = $region21
    $region20: #{tpu_custom_call.1} parent=1 // pred_region
      %42 = dma.done [#allocation6], 6144
    $region21: #{tpu_custom_call.1} parent=1 // pred_fallthru
      _
    %v43 = vld [vmem:[#allocation2] sm:$0xff]
    %v44 = vld [vmem:[#allocation2 + $0x8] sm:$0xff]
    %v45 = vld [vmem:[#allocation5] sm:$0xff]
    %v46 = vld [vmem:[#allocation5 + $0x18] sm:$0xff]
    %v47 = vld [vmem:[#allocation5 + $0x30] sm:$0xff]
    %v48 = vld [vmem:[#allocation5 + $0x48] sm:$0xff]
    %v49 = vld [vmem:[#allocation5 + $0x60] sm:$0xff]
    %v50 = vld [vmem:[#allocation5 + $0x78] sm:$0xff]
    %v51 = vld [vmem:[#allocation5 + $0x90] sm:$0xff]
    %v52 = vld [vmem:[#allocation5 + $0xa8] sm:$0xff]
    %v53 = vld [vmem:[#allocation5 + $0xc0] sm:$0xff]
    %v54 = vld [vmem:[#allocation5 + $0xd8] sm:$0xff]
    %v55 = vld [vmem:[#allocation5 + $0xf0] sm:$0xff]
    %v56 = vld [vmem:[#allocation5 + $0x108] sm:$0xff]
    %v57 = vld [vmem:[#allocation5 + $0x120] sm:$0xff]
    %v58 = vld [vmem:[#allocation5 + $0x138] sm:$0xff]
    %v59 = vld [vmem:[#allocation5 + $0x150] sm:$0xff]
    %v60 = vld [vmem:[#allocation5 + $0x168] sm:$0xff]
    %61 = vmatprep.subr.mxu0 0.0
    %62 = vmatpush1.msra.mxu0 %v45
    %63 = vmatprep.subr.mxu0 0.0
    %64 = vmatpush1.msra.mxu0 %v46
    %65 = vmatprep.subr.mxu0 0.0
    %66 = vmatpush1.msra.mxu0 %v47
    %67 = vmatprep.subr.mxu0 0.0
    %68 = vmatpush1.msra.mxu0 %v48
    %69 = vmatprep.subr.mxu0 0.0
    %70 = vmatpush1.msra.mxu0 %v49
    %71 = vmatprep.subr.mxu0 0.0
    %72 = vmatpush1.msra.mxu0 %v50
    %73 = vmatprep.subr.mxu0 0.0
    %74 = vmatpush1.msra.mxu0 %v51
    %75 = vmatprep.subr.mxu0 0.0
    %76 = vmatpush1.msra.mxu0 %v52
    %77 = vmatprep.subr.mxu0 0.0
    %78 = vmatpush1.msra.mxu0 %v53
    %79 = vmatprep.subr.mxu0 0.0
    %80 = vmatpush1.msra.mxu0 %v54
    %81 = vmatprep.subr.mxu0 0.0
    %82 = vmatpush1.msra.mxu0 %v55
    %83 = vmatprep.subr.mxu0 0.0
    %84 = vmatpush1.msra.mxu0 %v56
    %85 = vmatprep.subr.mxu0 0.0
    %86 = vmatpush1.msra.mxu0 %v57
    %87 = vmatprep.subr.mxu0 0.0
    %88 = vmatpush1.msra.mxu0 %v58
    %89 = vmatprep.subr.mxu0 0.0
    %90 = vmatpush1.msra.mxu0 %v59
    %91 = vmatprep.subr.mxu0 0.0
    %92 = vmatpush1.msra.mxu0 %v60
    %93 = vmatprep.subr.mxu0 0.0
    %94 = vmatpush1.msra.mxu0 0.0
    %95 = vmatprep.subr.mxu0 0.0
    %96 = vmatpush1.msra.mxu0 0.0
    %97 = vmatprep.subr.mxu0 0.0
    %98 = vmatpush1.msra.mxu0 0.0
    %99 = vmatprep.subr.mxu0 0.0
    %100 = vmatpush1.msra.mxu0 0.0
    %101 = vmatprep.subr.mxu0 0.0
    %102 = vmatpush1.msra.mxu0 0.0
    %103 = vmatprep.subr.mxu0 0.0
    %104 = vmatpush1.msra.mxu0 0.0
    %105 = vmatprep.subr.mxu0 0.0
    %106 = vmatpush1.msra.mxu0 0.0
    %107 = vmatprep.subr.mxu0 0.0
    %108 = vmatpush1.msra.mxu0 0.0
    %109 = vmatprep.subr.mxu0 0.0
    %110 = vmatpush1.msra.mxu0 0.0
    %111 = vmatprep.subr.mxu0 0.0
    %112 = vmatpush1.msra.mxu0 0.0
    %113 = vmatprep.subr.mxu0 0.0
    %114 = vmatpush1.msra.mxu0 0.0
    %115 = vmatprep.subr.mxu0 0.0
    %116 = vmatpush1.msra.mxu0 0.0
    %117 = vmatprep.subr.mxu0 0.0
    %118 = vmatpush1.msra.mxu0 0.0
    %119 = vmatprep.subr.mxu0 0.0
    %120 = vmatpush1.msra.mxu0 0.0
    %121 = vmatprep.subr.mxu0 0.0
    %122 = vmatpush1.msra.mxu0 0.0
    %123 = vmatprep.subr.mxu0 0.0
    %124 = vmatpush1.msra.mxu0 0.0
    %125 = vmatprep.mubr.f32.mxu0 0.0
    %126 = vmatmul.mubr.f32.gmra.mrb[0].mxu0 %v43
    %v127 = vpop.f32.mrb[0].mxu0
    %v128 = vadd.f32 0.0, %v127
    %v129 = vpop.f32.mrb[0].mxu0
    %130 = vmatprep.mubr.f32.mxu0 0.0
    %131 = vmatmul.mubr.f32.gmra.mrb[0].mxu0 %v44
    %v132 = vpop.f32.mrb[0].mxu0
    %v133 = vadd.f32 0.0, %v132
    %v134 = vpop.f32.mrb[0].mxu0
    %135 = vdwg.mxu0
    %v136 = vand.u32 2147483647, %v128
    %vm137 = vcmp.le.f32.partialorder %v136, 0.7853982
    %vm138 = vcmp.lt.s32.totalorder %v128, 0
    %v139 = vand.u32 %v128, 2139095040
    %v140 = vshrl.u32 %v139, 23
    %v141 = vsub.s32 %v140, 127
    %v142 = vand.u32 2147483647, %v128
    %v143 = vand.u32 %v142, 8388607
    %v144 = vor.u32 %v143, 8388608
    %v145 = vsub.s32 0, %v144
    %v146 = vadd.s32 %v141, 1
    %vm147 = vcmp.gt.s32.totalorder %v146, 0
    %v148 = vsel %vm147, %v146, 0
    %v149 = vshrl.u32 %v148, 5
    %v150 = vand.u32 %v148, 31
    %v151 = vsub.s32 32, %v150
    %v152 = vshrl.u32 683565275, %v151
    %v153 = vshll.u32 683565275, %v150
    %v154 = vshrl.u32 2475754826, %v151
    %v155 = vor.u32 %v153, %v154
    %v156 = vshll.u32 2475754826, %v150
    %v157 = vshrl.u32 2131351028, %v151
    %v158 = vor.u32 %v156, %v157
    %v159 = vshll.u32 2131351028, %v150
    %v160 = vshrl.u32 2102212464, %v151
    %v161 = vor.u32 %v159, %v160
    %v162 = vshll.u32 2102212464, %v150
    %v163 = vshrl.u32 920167782, %v151
    %v164 = vor.u32 %v162, %v163
    %v165 = vshll.u32 920167782, %v150
    %v166 = vshrl.u32 1326507024, %v151
    %v167 = vor.u32 %v165, %v166
    %vm168 = vcmp.lt.s32.totalorder %v149, 1
    %vm169 = vcmp.lt.s32.totalorder %v149, 2
    %vm170 = vcmp.lt.s32.totalorder %v149, 3
    %vm171 = vcmp.lt.s32.totalorder %v149, 4
    %v172 = vsel %vm168, %v152, %v155
    %v173 = vsel %vm171, %v161, 2102212464
    %v174 = vsel %vm170, %v158, %v173
    %v175 = vsel %vm169, %v172, %v174
    %v176 = vsel %vm168, %v155, %v158
    %v177 = vsel %vm171, %v164, 920167782
    %v178 = vsel %vm170, %v161, %v177
    %v179 = vsel %vm169, %v176, %v178
    %v180 = vsel %vm168, %v158, %v161
    %v181 = vsel %vm171, %v167, 1326507024
    %v182 = vsel %vm170, %v164, %v181
    %v183 = vsel %vm169, %v180, %v182
    %v184 = vshll.u32 %v144, 8
    %v185 = vmul.u32.u64.compose %v184, %v183
    %v186 = vextract.low.u32 %v185
    %v187 = vextract.high.u32 %v185
    %v188 = vmul.u32.u64.compose %v184, %v179
    %v189 = vextract.low.u32 %v188
    %v190 = vextract.high.u32 %v188
    %v191 = vmul.u32 %v184, %v175
    %v192 = vadd.s32 %v187, %v189
    %vm193 = vc.u32 %v187, %v189
    %v194 = vadd.s32 %v190, 1
    %v195 = vsel %vm193, %v194, %v190
    %v196 = vadd.s32 %v191, %v195
    %v197 = vadd.s32 %v196, 536870912
    %v198 = vshrl.u32 %v197, 30
    %v199 = vshll.u32 %v198, 30
    %v200 = vsub.s32 %v196, %v199
    %vm201 = vcmp.lt.s32.totalorder %v200, 0
    %v202 = vsub.s32 0, %v200
    %v203 = vsel %vm201, %v202, %v200
    %v204 = vclz %v203
    %v205 = vsub.s32 %v204, 2
    %vm206 = vcmp.gt.s32.totalorder 0, %v205
    %v207 = vsel %vm206, 0, %v205
    %v208 = vsub.s32 32, %v207
    %v209 = vshll.u32 %v200, %v207
    %v210 = vshrl.u32 %v192, %v208
    %v211 = vor.u32 %v209, %v210
    %v212 = vsub.s32 4294967266, %v207
    %v213 = vadd.s32 %v212, 127
    %v214 = vshll.u32 %v213, 23
    %v215 = vor.u32 4788187, %v214
    %v216 = vand.u32 2147483647, %v215
    %v218 = vcvt.s32.f32 %v211
    %v219 = vmul.f32 %v218, %v216
    %v220 = vxor.u32 %v219, 2147483648
    %v221 = vsel %vm138, %v220, %v219
    %v222 = vsub.s32 4, %v198
    %v223 = vsel %vm138, %v222, %v198
    %v224 = vsel %vm137, %v128, %v221
    %v225 = vsel %vm137, 0, %v223
    %v226 = vcosq.f32.pop %v224
    %v227 = vsinq.f32.pop %v224
    %vm228 = vweird.f32 %v128
    %v229 = vadd.s32 %v225, 3
    %v230 = vand.u32 %v229, 3
    %vm231 = vcmp.lt.s32.totalorder %v230, 2
    %vm232 = vcmp.eq.s32.totalorder %v230, 0
    %v233 = vxor.u32 %v227, 2147483648
    %v234 = vsel %vm232, %v226, %v233
    %vm235 = vcmp.eq.s32.totalorder %v230, 2
    %v236 = vxor.u32 %v226, 2147483648
    %v237 = vsel %vm235, %v236, %v227
    %v238 = vsel %vm231, %v234, %v237
    %v239 = vsel %vm228, nan, %v238
    %v240 = vand.u32 2147483647, %v133
    %vm241 = vcmp.le.f32.partialorder %v240, 0.7853982
    %vm242 = vcmp.lt.s32.totalorder %v133, 0
    %v243 = vand.u32 %v133, 2139095040
    %v244 = vshrl.u32 %v243, 23
    %v245 = vsub.s32 %v244, 127
    %v246 = vand.u32 2147483647, %v133
    %v247 = vand.u32 %v246, 8388607
    %v248 = vor.u32 %v247, 8388608
    %v249 = vsub.s32 0, %v248
    %v250 = vadd.s32 %v245, 1
    %vm251 = vcmp.gt.s32.totalorder %v250, 0
    %v252 = vsel %vm251, %v250, 0
    %v253 = vshrl.u32 %v252, 5
    %v254 = vand.u32 %v252, 31
    %v255 = vsub.s32 32, %v254
    %v256 = vshrl.u32 683565275, %v255
    %v257 = vshll.u32 683565275, %v254
    %v258 = vshrl.u32 2475754826, %v255
    %v259 = vor.u32 %v257, %v258
    %v260 = vshll.u32 2475754826, %v254
    %v261 = vshrl.u32 2131351028, %v255
    %v262 = vor.u32 %v260, %v261
    %v263 = vshll.u32 2131351028, %v254
    %v264 = vshrl.u32 2102212464, %v255
    %v265 = vor.u32 %v263, %v264
    %v266 = vshll.u32 2102212464, %v254
    %v267 = vshrl.u32 920167782, %v255
    %v268 = vor.u32 %v266, %v267
    %v269 = vshll.u32 920167782, %v254
    %v270 = vshrl.u32 1326507024, %v255
    %v271 = vor.u32 %v269, %v270
    %vm272 = vcmp.lt.s32.totalorder %v253, 1
    %vm273 = vcmp.lt.s32.totalorder %v253, 2
    %vm274 = vcmp.lt.s32.totalorder %v253, 3
    %vm275 = vcmp.lt.s32.totalorder %v253, 4
    %v276 = vsel %vm272, %v256, %v259
    %v277 = vsel %vm275, %v265, 2102212464
    %v278 = vsel %vm274, %v262, %v277
    %v279 = vsel %vm273, %v276, %v278
    %v280 = vsel %vm272, %v259, %v262
    %v281 = vsel %vm275, %v268, 920167782
    %v282 = vsel %vm274, %v265, %v281
    %v283 = vsel %vm273, %v280, %v282
    %v284 = vsel %vm272, %v262, %v265
    %v285 = vsel %vm275, %v271, 1326507024
    %v286 = vsel %vm274, %v268, %v285
    %v287 = vsel %vm273, %v284, %v286
    %v288 = vshll.u32 %v248, 8
    %v289 = vmul.u32.u64.compose %v288, %v287
    %v290 = vextract.low.u32 %v289
    %v291 = vextract.high.u32 %v289
    %v292 = vmul.u32.u64.compose %v288, %v283
    %v293 = vextract.low.u32 %v292
    %v294 = vextract.high.u32 %v292
    %v295 = vmul.u32 %v288, %v279
    %v296 = vadd.s32 %v291, %v293
    %vm297 = vc.u32 %v291, %v293
    %v298 = vadd.s32 %v294, 1
    %v299 = vsel %vm297, %v298, %v294
    %v300 = vadd.s32 %v295, %v299
    %v301 = vadd.s32 %v300, 536870912
    %v302 = vshrl.u32 %v301, 30
    %v303 = vshll.u32 %v302, 30
    %v304 = vsub.s32 %v300, %v303
    %vm305 = vcmp.lt.s32.totalorder %v304, 0
    %v306 = vsub.s32 0, %v304
    %v307 = vsel %vm305, %v306, %v304
    %v308 = vclz %v307
    %v309 = vsub.s32 %v308, 2
    %vm310 = vcmp.gt.s32.totalorder 0, %v309
    %v311 = vsel %vm310, 0, %v309
    %v312 = vsub.s32 32, %v311
    %v313 = vshll.u32 %v304, %v311
    %v314 = vshrl.u32 %v296, %v312
    %v315 = vor.u32 %v313, %v314
    %v316 = vsub.s32 4294967266, %v311
    %v317 = vadd.s32 %v316, 127
    %v318 = vshll.u32 %v317, 23
    %v319 = vor.u32 4788187, %v318
    %v320 = vand.u32 2147483647, %v319
    %v322 = vcvt.s32.f32 %v315
    %v323 = vmul.f32 %v322, %v320
    %v324 = vxor.u32 %v323, 2147483648
    %v325 = vsel %vm242, %v324, %v323
    %v326 = vsub.s32 4, %v302
    %v327 = vsel %vm242, %v326, %v302
    %v328 = vsel %vm241, %v133, %v325
    %v329 = vsel %vm241, 0, %v327
    %v330 = vcosq.f32.pop %v328
    %v331 = vsinq.f32.pop %v328
    %vm332 = vweird.f32 %v133
    %v333 = vadd.s32 %v329, 3
    %v334 = vand.u32 %v333, 3
    %vm335 = vcmp.lt.s32.totalorder %v334, 2
    %vm336 = vcmp.eq.s32.totalorder %v334, 0
    %v337 = vxor.u32 %v331, 2147483648
    %v338 = vsel %vm336, %v330, %v337
    %vm339 = vcmp.eq.s32.totalorder %v334, 2
    %v340 = vxor.u32 %v330, 2147483648
    %v341 = vsel %vm339, %v340, %v331
    %v342 = vsel %vm335, %v338, %v341
    %v343 = vsel %vm332, nan, %v342
    %v344 = vand.u32 2147483647, %v239
    %vm345 = vcmp.le.f32.partialorder %v344, 0.7853982
    %vm346 = vcmp.lt.s32.totalorder %v239, 0
    %v347 = vand.u32 %v239, 2139095040
    %v348 = vshrl.u32 %v347, 23
    %v349 = vsub.s32 %v348, 127
    %v350 = vand.u32 2147483647, %v239
    %v351 = vand.u32 %v350, 8388607
    %v352 = vor.u32 %v351, 8388608
    %v353 = vsub.s32 0, %v352
    %v354 = vadd.s32 %v349, 1
    %vm355 = vcmp.gt.s32.totalorder %v354, 0
    %v356 = vsel %vm355, %v354, 0
    %v357 = vshrl.u32 %v356, 5
    %v358 = vand.u32 %v356, 31
    %v359 = vsub.s32 32, %v358
    %v360 = vshrl.u32 683565275, %v359
    %v361 = vshll.u32 683565275, %v358
    %v362 = vshrl.u32 2475754826, %v359
    %v363 = vor.u32 %v361, %v362
    %v364 = vshll.u32 2475754826, %v358
    %v365 = vshrl.u32 2131351028, %v359
    %v366 = vor.u32 %v364, %v365
    %v367 = vshll.u32 2131351028, %v358
    %v368 = vshrl.u32 2102212464, %v359
    %v369 = vor.u32 %v367, %v368
    %v370 = vshll.u32 2102212464, %v358
    %v371 = vshrl.u32 920167782, %v359
    %v372 = vor.u32 %v370, %v371
    %v373 = vshll.u32 920167782, %v358
    %v374 = vshrl.u32 1326507024, %v359
    %v375 = vor.u32 %v373, %v374
    %vm376 = vcmp.lt.s32.totalorder %v357, 1
    %vm377 = vcmp.lt.s32.totalorder %v357, 2
    %vm378 = vcmp.lt.s32.totalorder %v357, 3
    %vm379 = vcmp.lt.s32.totalorder %v357, 4
    %v380 = vsel %vm376, %v360, %v363
    %v381 = vsel %vm379, %v369, 2102212464
    %v382 = vsel %vm378, %v366, %v381
    %v383 = vsel %vm377, %v380, %v382
    %v384 = vsel %vm376, %v363, %v366
    %v385 = vsel %vm379, %v372, 920167782
    %v386 = vsel %vm378, %v369, %v385
    %v387 = vsel %vm377, %v384, %v386
    %v388 = vsel %vm376, %v366, %v369
    %v389 = vsel %vm379, %v375, 1326507024
    %v390 = vsel %vm378, %v372, %v389
    %v391 = vsel %vm377, %v388, %v390
    %v392 = vshll.u32 %v352, 8
    %v393 = vmul.u32.u64.compose %v392, %v391
    %v394 = vextract.low.u32 %v393
    %v395 = vextract.high.u32 %v393
    %v396 = vmul.u32.u64.compose %v392, %v387
    %v397 = vextract.low.u32 %v396
    %v398 = vextract.high.u32 %v396
    %v399 = vmul.u32 %v392, %v383
    %v400 = vadd.s32 %v395, %v397
    %vm401 = vc.u32 %v395, %v397
    %v402 = vadd.s32 %v398, 1
    %v403 = vsel %vm401, %v402, %v398
    %v404 = vadd.s32 %v399, %v403
    %v405 = vadd.s32 %v404, 536870912
    %v406 = vshrl.u32 %v405, 30
    %v407 = vshll.u32 %v406, 30
    %v408 = vsub.s32 %v404, %v407
    %vm409 = vcmp.lt.s32.totalorder %v408, 0
    %v410 = vsub.s32 0, %v408
    %v411 = vsel %vm409, %v410, %v408
    %v412 = vclz %v411
    %v413 = vsub.s32 %v412, 2
    %vm414 = vcmp.gt.s32.totalorder 0, %v413
    %v415 = vsel %vm414, 0, %v413
    %v416 = vsub.s32 32, %v415
    %v417 = vshll.u32 %v408, %v415
    %v418 = vshrl.u32 %v400, %v416
    %v419 = vor.u32 %v417, %v418
    %v420 = vsub.s32 4294967266, %v415
    %v421 = vadd.s32 %v420, 127
    %v422 = vshll.u32 %v421, 23
    %v423 = vor.u32 4788187, %v422
    %v424 = vand.u32 2147483647, %v423
    %v426 = vcvt.s32.f32 %v419
    %v427 = vmul.f32 %v426, %v424
    %v428 = vxor.u32 %v427, 2147483648
    %v429 = vsel %vm346, %v428, %v427
    %v430 = vsub.s32 4, %v406
    %v431 = vsel %vm346, %v430, %v406
    %v432 = vsel %vm345, %v239, %v429
    %v433 = vsel %vm345, 0, %v431
    %v434 = vcosq.f32.pop %v432
    %v435 = vsinq.f32.pop %v432
    %vm436 = vweird.f32 %v239
    %v437 = vand.u32 %v433, 3
    %vm438 = vcmp.lt.s32.totalorder %v437, 2
    %vm439 = vcmp.eq.s32.totalorder %v437, 0
    %v440 = vxor.u32 %v435, 2147483648
    %v441 = vsel %vm439, %v434, %v440
    %vm442 = vcmp.eq.s32.totalorder %v437, 2
    %v443 = vxor.u32 %v434, 2147483648
    %v444 = vsel %vm442, %v443, %v435
    %v445 = vsel %vm438, %v441, %v444
    %v446 = vsel %vm436, nan, %v445
    %v447 = vand.u32 2147483647, %v343
    %vm448 = vcmp.le.f32.partialorder %v447, 0.7853982
    %vm449 = vcmp.lt.s32.totalorder %v343, 0
    %v450 = vand.u32 %v343, 2139095040
    %v451 = vshrl.u32 %v450, 23
    %v452 = vsub.s32 %v451, 127
    %v453 = vand.u32 2147483647, %v343
    %v454 = vand.u32 %v453, 8388607
    %v455 = vor.u32 %v454, 8388608
    %v456 = vsub.s32 0, %v455
    %v457 = vadd.s32 %v452, 1
    %vm458 = vcmp.gt.s32.totalorder %v457, 0
    %v459 = vsel %vm458, %v457, 0
    %v460 = vshrl.u32 %v459, 5
    %v461 = vand.u32 %v459, 31
    %v462 = vsub.s32 32, %v461
    %v463 = vshrl.u32 683565275, %v462
    %v464 = vshll.u32 683565275, %v461
    %v465 = vshrl.u32 2475754826, %v462
    %v466 = vor.u32 %v464, %v465
    %v467 = vshll.u32 2475754826, %v461
    %v468 = vshrl.u32 2131351028, %v462
    %v469 = vor.u32 %v467, %v468
    %v470 = vshll.u32 2131351028, %v461
    %v471 = vshrl.u32 2102212464, %v462
    %v472 = vor.u32 %v470, %v471
    %v473 = vshll.u32 2102212464, %v461
    %v474 = vshrl.u32 920167782, %v462
    %v475 = vor.u32 %v473, %v474
    %v476 = vshll.u32 920167782, %v461
    %v477 = vshrl.u32 1326507024, %v462
    %v478 = vor.u32 %v476, %v477
    %vm479 = vcmp.lt.s32.totalorder %v460, 1
    %vm480 = vcmp.lt.s32.totalorder %v460, 2
    %vm481 = vcmp.lt.s32.totalorder %v460, 3
    %vm482 = vcmp.lt.s32.totalorder %v460, 4
    %v483 = vsel %vm479, %v463, %v466
    %v484 = vsel %vm482, %v472, 2102212464
    %v485 = vsel %vm481, %v469, %v484
    %v486 = vsel %vm480, %v483, %v485
    %v487 = vsel %vm479, %v466, %v469
    %v488 = vsel %vm482, %v475, 920167782
    %v489 = vsel %vm481, %v472, %v488
    %v490 = vsel %vm480, %v487, %v489
    %v491 = vsel %vm479, %v469, %v472
    %v492 = vsel %vm482, %v478, 1326507024
    %v493 = vsel %vm481, %v475, %v492
    %v494 = vsel %vm480, %v491, %v493
    %v495 = vshll.u32 %v455, 8
    %v496 = vmul.u32.u64.compose %v495, %v494
    %v497 = vextract.low.u32 %v496
    %v498 = vextract.high.u32 %v496
    %v499 = vmul.u32.u64.compose %v495, %v490
    %v500 = vextract.low.u32 %v499
    %v501 = vextract.high.u32 %v499
    %v502 = vmul.u32 %v495, %v486
    %v503 = vadd.s32 %v498, %v500
    %vm504 = vc.u32 %v498, %v500
    %v505 = vadd.s32 %v501, 1
    %v506 = vsel %vm504, %v505, %v501
    %v507 = vadd.s32 %v502, %v506
    %v508 = vadd.s32 %v507, 536870912
    %v509 = vshrl.u32 %v508, 30
    %v510 = vshll.u32 %v509, 30
    %v511 = vsub.s32 %v507, %v510
    %vm512 = vcmp.lt.s32.totalorder %v511, 0
    %v513 = vsub.s32 0, %v511
    %v514 = vsel %vm512, %v513, %v511
    %v515 = vclz %v514
    %v516 = vsub.s32 %v515, 2
    %vm517 = vcmp.gt.s32.totalorder 0, %v516
    %v518 = vsel %vm517, 0, %v516
    %v519 = vsub.s32 32, %v518
    %v520 = vshll.u32 %v511, %v518
    %v521 = vshrl.u32 %v503, %v519
    %v522 = vor.u32 %v520, %v521
    %v523 = vsub.s32 4294967266, %v518
    %v524 = vadd.s32 %v523, 127
    %v525 = vshll.u32 %v524, 23
    %v526 = vor.u32 4788187, %v525
    %v527 = vand.u32 2147483647, %v526
    %v529 = vcvt.s32.f32 %v522
    %v530 = vmul.f32 %v529, %v527
    %v531 = vxor.u32 %v530, 2147483648
    %v532 = vsel %vm449, %v531, %v530
    %v533 = vsub.s32 4, %v509
    %v534 = vsel %vm449, %v533, %v509
    %v535 = vsel %vm448, %v343, %v532
    %v536 = vsel %vm448, 0, %v534
    %v537 = vcosq.f32.pop %v535
    %v538 = vsinq.f32.pop %v535
    %vm539 = vweird.f32 %v343
    %v540 = vand.u32 %v536, 3
    %vm541 = vcmp.lt.s32.totalorder %v540, 2
    %vm542 = vcmp.eq.s32.totalorder %v540, 0
    %v543 = vxor.u32 %v538, 2147483648
    %v544 = vsel %vm542, %v537, %v543
    %vm545 = vcmp.eq.s32.totalorder %v540, 2
    %v546 = vxor.u32 %v537, 2147483648
    %v547 = vsel %vm545, %v546, %v538
    %v548 = vsel %vm541, %v544, %v547
    %v549 = vsel %vm539, nan, %v548
    %v550 = vand.u32 2147483647, %v239
    %vm551 = vcmp.le.f32.partialorder %v550, 0.7853982
    %vm552 = vcmp.lt.s32.totalorder %v239, 0
    %v553 = vand.u32 %v239, 2139095040
    %v554 = vshrl.u32 %v553, 23
    %v555 = vsub.s32 %v554, 127
    %v556 = vand.u32 2147483647, %v239
    %v557 = vand.u32 %v556, 8388607
    %v558 = vor.u32 %v557, 8388608
    %v559 = vsub.s32 0, %v558
    %v560 = vadd.s32 %v555, 1
    %vm561 = vcmp.gt.s32.totalorder %v560, 0
    %v562 = vsel %vm561, %v560, 0
    %v563 = vshrl.u32 %v562, 5
    %v564 = vand.u32 %v562, 31
    %v565 = vsub.s32 32, %v564
    %v566 = vshrl.u32 683565275, %v565
    %v567 = vshll.u32 683565275, %v564
    %v568 = vshrl.u32 2475754826, %v565
    %v569 = vor.u32 %v567, %v568
    %v570 = vshll.u32 2475754826, %v564
    %v571 = vshrl.u32 2131351028, %v565
    %v572 = vor.u32 %v570, %v571
    %v573 = vshll.u32 2131351028, %v564
    %v574 = vshrl.u32 2102212464, %v565
    %v575 = vor.u32 %v573, %v574
    %v576 = vshll.u32 2102212464, %v564
    %v577 = vshrl.u32 920167782, %v565
    %v578 = vor.u32 %v576, %v577
    %v579 = vshll.u32 920167782, %v564
    %v580 = vshrl.u32 1326507024, %v565
    %v581 = vor.u32 %v579, %v580
    %vm582 = vcmp.lt.s32.totalorder %v563, 1
    %vm583 = vcmp.lt.s32.totalorder %v563, 2
    %vm584 = vcmp.lt.s32.totalorder %v563, 3
    %vm585 = vcmp.lt.s32.totalorder %v563, 4
    %v586 = vsel %vm582, %v566, %v569
    %v587 = vsel %vm585, %v575, 2102212464
    %v588 = vsel %vm584, %v572, %v587
    %v589 = vsel %vm583, %v586, %v588
    %v590 = vsel %vm582, %v569, %v572
    %v591 = vsel %vm585, %v578, 920167782
    %v592 = vsel %vm584, %v575, %v591
    %v593 = vsel %vm583, %v590, %v592
    %v594 = vsel %vm582, %v572, %v575
    %v595 = vsel %vm585, %v581, 1326507024
    %v596 = vsel %vm584, %v578, %v595
    %v597 = vsel %vm583, %v594, %v596
    %v598 = vshll.u32 %v558, 8
    %v599 = vmul.u32.u64.compose %v598, %v597
    %v600 = vextract.low.u32 %v599
    %v601 = vextract.high.u32 %v599
    %v602 = vmul.u32.u64.compose %v598, %v593
    %v603 = vextract.low.u32 %v602
    %v604 = vextract.high.u32 %v602
    %v605 = vmul.u32 %v598, %v589
    %v606 = vadd.s32 %v601, %v603
    %vm607 = vc.u32 %v601, %v603
    %v608 = vadd.s32 %v604, 1
    %v609 = vsel %vm607, %v608, %v604
    %v610 = vadd.s32 %v605, %v609
    %v611 = vadd.s32 %v610, 536870912
    %v612 = vshrl.u32 %v611, 30
    %v613 = vshll.u32 %v612, 30
    %v614 = vsub.s32 %v610, %v613
    %vm615 = vcmp.lt.s32.totalorder %v614, 0
    %v616 = vsub.s32 0, %v614
    %v617 = vsel %vm615, %v616, %v614
    %v618 = vclz %v617
    %v619 = vsub.s32 %v618, 2
    %vm620 = vcmp.gt.s32.totalorder 0, %v619
    %v621 = vsel %vm620, 0, %v619
    %v622 = vsub.s32 32, %v621
    %v623 = vshll.u32 %v614, %v621
    %v624 = vshrl.u32 %v606, %v622
    %v625 = vor.u32 %v623, %v624
    %v626 = vsub.s32 4294967266, %v621
    %v627 = vadd.s32 %v626, 127
    %v628 = vshll.u32 %v627, 23
    %v629 = vor.u32 4788187, %v628
    %v630 = vand.u32 2147483647, %v629
    %v632 = vcvt.s32.f32 %v625
    %v633 = vmul.f32 %v632, %v630
    %v634 = vxor.u32 %v633, 2147483648
    %v635 = vsel %vm552, %v634, %v633
    %v636 = vsub.s32 4, %v612
    %v637 = vsel %vm552, %v636, %v612
    %v638 = vsel %vm551, %v239, %v635
    %v639 = vsel %vm551, 0, %v637
    %v640 = vcosq.f32.pop %v638
    %v641 = vsinq.f32.pop %v638
    %vm642 = vweird.f32 %v239
    %v643 = vadd.s32 %v639, 3
    %v644 = vand.u32 %v643, 3
    %vm645 = vcmp.lt.s32.totalorder %v644, 2
    %vm646 = vcmp.eq.s32.totalorder %v644, 0
    %v647 = vxor.u32 %v641, 2147483648
    %v648 = vsel %vm646, %v640, %v647
    %vm649 = vcmp.eq.s32.totalorder %v644, 2
    %v650 = vxor.u32 %v640, 2147483648
    %v651 = vsel %vm649, %v650, %v641
    %v652 = vsel %vm645, %v648, %v651
    %v653 = vsel %vm642, nan, %v652
    %v654 = vand.u32 2147483647, %v343
    %vm655 = vcmp.le.f32.partialorder %v654, 0.7853982
    %vm656 = vcmp.lt.s32.totalorder %v343, 0
    %v657 = vand.u32 %v343, 2139095040
    %v658 = vshrl.u32 %v657, 23
    %v659 = vsub.s32 %v658, 127
    %v660 = vand.u32 2147483647, %v343
    %v661 = vand.u32 %v660, 8388607
    %v662 = vor.u32 %v661, 8388608
    %v663 = vsub.s32 0, %v662
    %v664 = vadd.s32 %v659, 1
    %vm665 = vcmp.gt.s32.totalorder %v664, 0
    %v666 = vsel %vm665, %v664, 0
    %v667 = vshrl.u32 %v666, 5
    %v668 = vand.u32 %v666, 31
    %v669 = vsub.s32 32, %v668
    %v670 = vshrl.u32 683565275, %v669
    %v671 = vshll.u32 683565275, %v668
    %v672 = vshrl.u32 2475754826, %v669
    %v673 = vor.u32 %v671, %v672
    %v674 = vshll.u32 2475754826, %v668
    %v675 = vshrl.u32 2131351028, %v669
    %v676 = vor.u32 %v674, %v675
    %v677 = vshll.u32 2131351028, %v668
    %v678 = vshrl.u32 2102212464, %v669
    %v679 = vor.u32 %v677, %v678
    %v680 = vshll.u32 2102212464, %v668
    %v681 = vshrl.u32 920167782, %v669
    %v682 = vor.u32 %v680, %v681
    %v683 = vshll.u32 920167782, %v668
    %v684 = vshrl.u32 1326507024, %v669
    %v685 = vor.u32 %v683, %v684
    %vm686 = vcmp.lt.s32.totalorder %v667, 1
    %vm687 = vcmp.lt.s32.totalorder %v667, 2
    %vm688 = vcmp.lt.s32.totalorder %v667, 3
    %vm689 = vcmp.lt.s32.totalorder %v667, 4
    %v690 = vsel %vm686, %v670, %v673
    %v691 = vsel %vm689, %v679, 2102212464
    %v692 = vsel %vm688, %v676, %v691
    %v693 = vsel %vm687, %v690, %v692
    %v694 = vsel %vm686, %v673, %v676
    %v695 = vsel %vm689, %v682, 920167782
    %v696 = vsel %vm688, %v679, %v695
    %v697 = vsel %vm687, %v694, %v696
    %v698 = vsel %vm686, %v676, %v679
    %v699 = vsel %vm689, %v685, 1326507024
    %v700 = vsel %vm688, %v682, %v699
    %v701 = vsel %vm687, %v698, %v700
    %v702 = vshll.u32 %v662, 8
    %v703 = vmul.u32.u64.compose %v702, %v701
    %v704 = vextract.low.u32 %v703
    %v705 = vextract.high.u32 %v703
    %v706 = vmul.u32.u64.compose %v702, %v697
    %v707 = vextract.low.u32 %v706
    %v708 = vextract.high.u32 %v706
    %v709 = vmul.u32 %v702, %v693
    %v710 = vadd.s32 %v705, %v707
    %vm711 = vc.u32 %v705, %v707
    %v712 = vadd.s32 %v708, 1
    %v713 = vsel %vm711, %v712, %v708
    %v714 = vadd.s32 %v709, %v713
    %v715 = vadd.s32 %v714, 536870912
    %v716 = vshrl.u32 %v715, 30
    %v717 = vshll.u32 %v716, 30
    %v718 = vsub.s32 %v714, %v717
    %vm719 = vcmp.lt.s32.totalorder %v718, 0
    %v720 = vsub.s32 0, %v718
    %v721 = vsel %vm719, %v720, %v718
    %v722 = vclz %v721
    %v723 = vsub.s32 %v722, 2
    %vm724 = vcmp.gt.s32.totalorder 0, %v723
    %v725 = vsel %vm724, 0, %v723
    %v726 = vsub.s32 32, %v725
    %v727 = vshll.u32 %v718, %v725
    %v728 = vshrl.u32 %v710, %v726
    %v729 = vor.u32 %v727, %v728
    %v730 = vsub.s32 4294967266, %v725
    %v731 = vadd.s32 %v730, 127
    %v732 = vshll.u32 %v731, 23
    %v733 = vor.u32 4788187, %v732
    %v734 = vand.u32 2147483647, %v733
    %v736 = vcvt.s32.f32 %v729
    %v737 = vmul.f32 %v736, %v734
    %v738 = vxor.u32 %v737, 2147483648
    %v739 = vsel %vm656, %v738, %v737
    %v740 = vsub.s32 4, %v716
    %v741 = vsel %vm656, %v740, %v716
    %v742 = vsel %vm655, %v343, %v739
    %v743 = vsel %vm655, 0, %v741
    %v744 = vcosq.f32.pop %v742
    %v745 = vsinq.f32.pop %v742
    %vm746 = vweird.f32 %v343
    %v747 = vadd.s32 %v743, 3
    %v748 = vand.u32 %v747, 3
    %vm749 = vcmp.lt.s32.totalorder %v748, 2
    %vm750 = vcmp.eq.s32.totalorder %v748, 0
    %v751 = vxor.u32 %v745, 2147483648
    %v752 = vsel %vm750, %v744, %v751
    %vm753 = vcmp.eq.s32.totalorder %v748, 2
    %v754 = vxor.u32 %v744, 2147483648
    %v755 = vsel %vm753, %v754, %v745
    %v756 = vsel %vm749, %v752, %v755
    %v757 = vsel %vm746, nan, %v756
    %v758 = vld [vmem:[#allocation5 + $0x8] sm:$0xff]
    %v759 = vld [vmem:[#allocation5 + $0x20] sm:$0xff]
    %v760 = vld [vmem:[#allocation5 + $0x38] sm:$0xff]
    %v761 = vld [vmem:[#allocation5 + $0x50] sm:$0xff]
    %v762 = vld [vmem:[#allocation5 + $0x68] sm:$0xff]
    %v763 = vld [vmem:[#allocation5 + $0x80] sm:$0xff]
    %v764 = vld [vmem:[#allocation5 + $0x98] sm:$0xff]
    %v765 = vld [vmem:[#allocation5 + $0xb0] sm:$0xff]
    %v766 = vld [vmem:[#allocation5 + $0xc8] sm:$0xff]
    %v767 = vld [vmem:[#allocation5 + $0xe0] sm:$0xff]
    %v768 = vld [vmem:[#allocation5 + $0xf8] sm:$0xff]
    %v769 = vld [vmem:[#allocation5 + $0x110] sm:$0xff]
    %v770 = vld [vmem:[#allocation5 + $0x128] sm:$0xff]
    %v771 = vld [vmem:[#allocation5 + $0x140] sm:$0xff]
    %v772 = vld [vmem:[#allocation5 + $0x158] sm:$0xff]
    %v773 = vld [vmem:[#allocation5 + $0x170] sm:$0xff]
    %774 = vmatprep.subr.mxu0 0.0
    %775 = vmatpush1.msra.mxu0 %v758
    %776 = vmatprep.subr.mxu0 0.0
    %777 = vmatpush1.msra.mxu0 %v759
    %778 = vmatprep.subr.mxu0 0.0
    %779 = vmatpush1.msra.mxu0 %v760
    %780 = vmatprep.subr.mxu0 0.0
    %781 = vmatpush1.msra.mxu0 %v761
    %782 = vmatprep.subr.mxu0 0.0
    %783 = vmatpush1.msra.mxu0 %v762
    %784 = vmatprep.subr.mxu0 0.0
    %785 = vmatpush1.msra.mxu0 %v763
    %786 = vmatprep.subr.mxu0 0.0
    %787 = vmatpush1.msra.mxu0 %v764
    %788 = vmatprep.subr.mxu0 0.0
    %789 = vmatpush1.msra.mxu0 %v765
    %790 = vmatprep.subr.mxu0 0.0
    %791 = vmatpush1.msra.mxu0 %v766
    %792 = vmatprep.subr.mxu0 0.0
    %793 = vmatpush1.msra.mxu0 %v767
    %794 = vmatprep.subr.mxu0 0.0
    %795 = vmatpush1.msra.mxu0 %v768
    %796 = vmatprep.subr.mxu0 0.0
    %797 = vmatpush1.msra.mxu0 %v769
    %798 = vmatprep.subr.mxu0 0.0
    %799 = vmatpush1.msra.mxu0 %v770
    %800 = vmatprep.subr.mxu0 0.0
    %801 = vmatpush1.msra.mxu0 %v771
    %802 = vmatprep.subr.mxu0 0.0
    %803 = vmatpush1.msra.mxu0 %v772
    %804 = vmatprep.subr.mxu0 0.0
    %805 = vmatpush1.msra.mxu0 %v773
    %806 = vmatprep.subr.mxu0 0.0
    %807 = vmatpush1.msra.mxu0 0.0
    %808 = vmatprep.subr.mxu0 0.0
    %809 = vmatpush1.msra.mxu0 0.0
    %810 = vmatprep.subr.mxu0 0.0
    %811 = vmatpush1.msra.mxu0 0.0
    %812 = vmatprep.subr.mxu0 0.0
    %813 = vmatpush1.msra.mxu0 0.0
    %814 = vmatprep.subr.mxu0 0.0
    %815 = vmatpush1.msra.mxu0 0.0
    %816 = vmatprep.subr.mxu0 0.0
    %817 = vmatpush1.msra.mxu0 0.0
    %818 = vmatprep.subr.mxu0 0.0
    %819 = vmatpush1.msra.mxu0 0.0
    %820 = vmatprep.subr.mxu0 0.0
    %821 = vmatpush1.msra.mxu0 0.0
    %822 = vmatprep.subr.mxu0 0.0
    %823 = vmatpush1.msra.mxu0 0.0
    %824 = vmatprep.subr.mxu0 0.0
    %825 = vmatpush1.msra.mxu0 0.0
    %826 = vmatprep.subr.mxu0 0.0
    %827 = vmatpush1.msra.mxu0 0.0
    %828 = vmatprep.subr.mxu0 0.0
    %829 = vmatpush1.msra.mxu0 0.0
    %830 = vmatprep.subr.mxu0 0.0
    %831 = vmatpush1.msra.mxu0 0.0
    %832 = vmatprep.subr.mxu0 0.0
    %833 = vmatpush1.msra.mxu0 0.0
    %834 = vmatprep.subr.mxu0 0.0
    %835 = vmatpush1.msra.mxu0 0.0
    %836 = vmatprep.subr.mxu0 0.0
    %837 = vmatpush1.msra.mxu0 0.0
    %838 = vmatprep.mubr.f32.mxu0 0.0
    %839 = vmatmul.mubr.f32.gmra.mrb[0].mxu0 %v43
    %v840 = vpop.f32.mrb[0].mxu0
    %v841 = vadd.f32 0.0, %v840
    %v842 = vpop.f32.mrb[0].mxu0
    %843 = vmatprep.mubr.f32.mxu0 0.0
    %844 = vmatmul.mubr.f32.gmra.mrb[0].mxu0 %v44
    %v845 = vpop.f32.mrb[0].mxu0
    %v846 = vadd.f32 0.0, %v845
    %v847 = vpop.f32.mrb[0].mxu0
    %848 = vdwg.mxu0
    %850 = vset.pattern.permute.xlu0 32
    %851 = vperm.xlu0 %850, %v446
    %v852 = vpop.permute.xlu0 %851
    %855 = vset.pattern.permute.xlu0 32
    %856 = vperm.xlu0 %855, %v549
    %v857 = vpop.permute.xlu0 %856
    %v859 = vmul.f32 %v852, %v841
    %v860 = vmul.f32 %v857, %v846
    %v861 = vadd.f32 %v128, %v859
    %v862 = vadd.f32 %v133, %v860
    %v863 = vld [vmem:[%s2] sm:$0x1]
    %v865 = vlaneseq
    %v866 = vshrl.u32 %v865, 7
    %v867 = vsub.s32 0, %v866
    %v868 = vrot.slane %v863, %v867
    %v870 = vadd.f32 %v861, %v868
    %v871 = vadd.f32 %v862, %v868
    %v872 = vld [vmem:[#allocation5 + $0x10] sm:$0xff]
    %v873 = vld [vmem:[#allocation5 + $0x28] sm:$0xff]
    %v874 = vld [vmem:[#allocation5 + $0x40] sm:$0xff]
    %v875 = vld [vmem:[#allocation5 + $0x58] sm:$0xff]
    %v876 = vld [vmem:[#allocation5 + $0x70] sm:$0xff]
    %v877 = vld [vmem:[#allocation5 + $0x88] sm:$0xff]
    %v878 = vld [vmem:[#allocation5 + $0xa0] sm:$0xff]
    %v879 = vld [vmem:[#allocation5 + $0xb8] sm:$0xff]
    %v880 = vld [vmem:[#allocation5 + $0xd0] sm:$0xff]
    %v881 = vld [vmem:[#allocation5 + $0xe8] sm:$0xff]
    %v882 = vld [vmem:[#allocation5 + $0x100] sm:$0xff]
    %v883 = vld [vmem:[#allocation5 + $0x118] sm:$0xff]
    %v884 = vld [vmem:[#allocation5 + $0x130] sm:$0xff]
    %v885 = vld [vmem:[#allocation5 + $0x148] sm:$0xff]
    %v886 = vld [vmem:[#allocation5 + $0x160] sm:$0xff]
    %v887 = vld [vmem:[#allocation5 + $0x178] sm:$0xff]
    %888 = vmatprep.subr.mxu0 0.0
    %889 = vmatpush1.msra.mxu0 %v872
    %890 = vmatprep.subr.mxu0 0.0
    %891 = vmatpush1.msra.mxu0 %v873
    %892 = vmatprep.subr.mxu0 0.0
    %893 = vmatpush1.msra.mxu0 %v874
    %894 = vmatprep.subr.mxu0 0.0
    %895 = vmatpush1.msra.mxu0 %v875
    %896 = vmatprep.subr.mxu0 0.0
    %897 = vmatpush1.msra.mxu0 %v876
    %898 = vmatprep.subr.mxu0 0.0
    %899 = vmatpush1.msra.mxu0 %v877
    %900 = vmatprep.subr.mxu0 0.0
    %901 = vmatpush1.msra.mxu0 %v878
    %902 = vmatprep.subr.mxu0 0.0
    %903 = vmatpush1.msra.mxu0 %v879
    %904 = vmatprep.subr.mxu0 0.0
    %905 = vmatpush1.msra.mxu0 %v880
    %906 = vmatprep.subr.mxu0 0.0
    %907 = vmatpush1.msra.mxu0 %v881
    %908 = vmatprep.subr.mxu0 0.0
    %909 = vmatpush1.msra.mxu0 %v882
    %910 = vmatprep.subr.mxu0 0.0
    %911 = vmatpush1.msra.mxu0 %v883
    %912 = vmatprep.subr.mxu0 0.0
    %913 = vmatpush1.msra.mxu0 %v884
    %914 = vmatprep.subr.mxu0 0.0
    %915 = vmatpush1.msra.mxu0 %v885
    %916 = vmatprep.subr.mxu0 0.0
    %917 = vmatpush1.msra.mxu0 %v886
    %918 = vmatprep.subr.mxu0 0.0
    %919 = vmatpush1.msra.mxu0 %v887
    %920 = vmatprep.subr.mxu0 0.0
    %921 = vmatpush1.msra.mxu0 0.0
    %922 = vmatprep.subr.mxu0 0.0
    %923 = vmatpush1.msra.mxu0 0.0
    %924 = vmatprep.subr.mxu0 0.0
    %925 = vmatpush1.msra.mxu0 0.0
    %926 = vmatprep.subr.mxu0 0.0
    %927 = vmatpush1.msra.mxu0 0.0
    %928 = vmatprep.subr.mxu0 0.0
    %929 = vmatpush1.msra.mxu0 0.0
    %930 = vmatprep.subr.mxu0 0.0
    %931 = vmatpush1.msra.mxu0 0.0
    %932 = vmatprep.subr.mxu0 0.0
    %933 = vmatpush1.msra.mxu0 0.0
    %934 = vmatprep.subr.mxu0 0.0
    %935 = vmatpush1.msra.mxu0 0.0
    %936 = vmatprep.subr.mxu0 0.0
    %937 = vmatpush1.msra.mxu0 0.0
    %938 = vmatprep.subr.mxu0 0.0
    %939 = vmatpush1.msra.mxu0 0.0
    %940 = vmatprep.subr.mxu0 0.0
    %941 = vmatpush1.msra.mxu0 0.0
    %942 = vmatprep.subr.mxu0 0.0
    %943 = vmatpush1.msra.mxu0 0.0
    %944 = vmatprep.subr.mxu0 0.0
    %945 = vmatpush1.msra.mxu0 0.0
    %946 = vmatprep.subr.mxu0 0.0
    %947 = vmatpush1.msra.mxu0 0.0
    %948 = vmatprep.subr.mxu0 0.0
    %949 = vmatpush1.msra.mxu0 0.0
    %950 = vmatprep.subr.mxu0 0.0
    %951 = vmatpush1.msra.mxu0 0.0
    %952 = vmatprep.mubr.f32.mxu0 0.0
    %953 = vmatmul.mubr.f32.gmra.mrb[0].mxu0 %v43
    %v954 = vpop.f32.mrb[0].mxu0
    %v955 = vadd.f32 0.0, %v954
    %v956 = vpop.f32.mrb[0].mxu0
    %957 = vmatprep.mubr.f32.mxu0 0.0
    %958 = vmatmul.mubr.f32.gmra.mrb[0].mxu0 %v44
    %v959 = vpop.f32.mrb[0].mxu0
    %v960 = vadd.f32 0.0, %v959
    %v961 = vpop.f32.mrb[0].mxu0
    %962 = vdwg.mxu0
    %964 = vset.pattern.permute.xlu0 32
    %965 = vperm.xlu0 %964, %v653
    %v966 = vpop.permute.xlu0 %965
    %969 = vset.pattern.permute.xlu0 32
    %970 = vperm.xlu0 %969, %v757
    %v971 = vpop.permute.xlu0 %970
    %v973 = vmul.f32 %v966, %v955
    %v974 = vmul.f32 %v971, %v960
    %v975 = vadd.f32 %v870, %v973
    %v976 = vadd.f32 %v871, %v974
    %v977 = vmul.f32 %v975, 1.442695
    %v978 = vpow.pop %v977
    %v979 = vmul.f32 %v976, 1.442695
    %v980 = vpow.pop %v979
    %v981 = vsub.f32 0.0, %v975
    %v982 = vsub.f32 0.0, %v976
    %v983 = vmul.f32 %v981, 1.442695
    %v984 = vpow.pop %v983
    %v985 = vmul.f32 %v982, 1.442695
    %v986 = vpow.pop %v985
    %v987 = vsub.f32 %v978, %v984
    %v988 = vsub.f32 %v980, %v986
    %v989 = vmul.f32 %v987, 0.5
    %v990 = vmul.f32 %v988, 0.5
    %991 = vst [vmem:[#allocation7] sm:$0xff] %v989
    %992 = vst [vmem:[#allocation7 + $0x8] sm:$0xff] %v990
    // Predicated region
    $region22: #{tpu_custom_call.1} parent=1 // pred_check
      _
    $region23: #{tpu_custom_call.1} parent=1 // pred_check_branch
      %994 = sbr.rel (0) target = $region25
    $region24: #{tpu_custom_call.1} parent=1 // pred_region
      %s996 = ssub.s32 256, 256
      %997 = vsyncadd [#allocation4], %s996
      %s998 = sshll.u32 [#allocation7], 4
      %s999 = int_to_ptr.vmem [resolvable:$true] %s998
      %1004 = dma.vmem_to_hbm [thread:$0]  %s999, 256, %s3, [#allocation4], 128, 128, 8
    $region25: #{tpu_custom_call.1} parent=1 // pred_fallthru
      _
    // Predicated region
    $region26: #{tpu_custom_call.1} parent=1 // pred_check
      _
    $region27: #{tpu_custom_call.1} parent=1 // pred_check_branch
      %1006 = sbr.rel (0) target = $region29
    $region28: #{tpu_custom_call.1} parent=1 // pred_region
      %1007 = dma.done [#allocation4], 256
    $region29: #{tpu_custom_call.1} parent=1 // pred_fallthru
      _
    %1008 = vsyncpa [#allocation3], 1
    %1009 = vsyncpa [#allocation6], 1
    %1010 = vsyncpa [#allocation4], 1

// kernel: tpu_custom_call.1
$region0: #{tpu_custom_call.1}
  #allocation0 [shape = 'u32[]', space=smem, size = 0x4, offset = 0x4, fixed_abs, tag = 'smem constant byte address 0x4 - core index']
  #allocation1 [shape = 'u32[144,128]{1,0:T(1,128)}', space=vmem, size = 0x12000, scoped, tag = 'internal scratch']
  %s0 = inlined_call_operand.hbm [shape: f32[16,128], index: 0, kind: input, shape index: {}]
  %s1 = inlined_call_operand.hbm [shape: f32[128,384], index: 1, kind: input, shape index: {}]
  %s2 = inlined_call_operand.vmem [shape: f32[1,128], index: 2, kind: input, shape index: {}]
  %s3 = inlined_call_operand.hbm [shape: f32[16,128], index: 3, kind: output, shape index: {}]
  %s4 = sld [smem:[#allocation0]]
  $region30: #{tpu_custom_call.1} parent=0
    _
  %s6 = ssub.s32 1, %s4
  %s7 = scalar_select 0, %s6, %s4
  $region1: #{tpu_custom_call.1} parent=0
    #allocation2 [shape = 'u8[8192]{0}', space=vmem, size = 0x2000, scoped, tag = 'input window, operand 0, single buffered']
    #allocation3 [shape = 's32[1]{0}', space=sflag, size = 0x4, scoped, tag = 'scoped memory for tpu_custom_call.1']
    #allocation4 [shape = 's32[1]{0}', space=sflag, size = 0x4, scoped, tag = 'scoped memory for tpu_custom_call.1']
    #allocation5 [shape = 'u8[196608]{0}', space=vmem, size = 0x30000, scoped, tag = 'input window, operand 1, single buffered']
    #allocation6 [shape = 's32[1]{0}', space=sflag, size = 0x4, scoped, tag = 'scoped memory for tpu_custom_call.1']
    #allocation7 [shape = 'u8[8192]{0}', space=vmem, size = 0x2000, scoped, tag = 'output window, operand 0, single buffered']
    %8 = vsyncpa [#allocation3], 0
    %9 = vsyncpa [#allocation6], 0
    %10 = vsyncpa [#allocation4], 0
    // Predicated region
    $region2: #{tpu_custom_call.1} parent=1 // pred_check
      _
    $region3: #{tpu_custom_call.1} parent=1 // pred_check_branch
      %12 = sbr.rel (0) target = $region5
    $region4: #{tpu_custom_call.1} parent=1 // pred_region
      %s14 = ssub.s32 256, 256
      %15 = vsyncadd [#allocation3], %s14
      %s16 = sshll.u32 [#allocation2], 4
      %s17 = int_to_ptr.vmem [resolvable:$true] %s16
      %22 = dma.hbm_to_vmem [thread:$0]  %s0, 256, %s17, [#allocation3], 128, 128, 8
    $region5: #{tpu_custom_call.1} parent=1 // pred_fallthru
      _
    // Predicated region
    $region6: #{tpu_custom_call.1} parent=1 // pred_check
      _
    $region7: #{tpu_custom_call.1} parent=1 // pred_check_branch
      %24 = sbr.rel (0) target = $region9
    $region8: #{tpu_custom_call.1} parent=1 // pred_region
      %s26 = ssub.s32 6144, 6144
      %27 = vsyncadd [#allocation6], %s26
      %s28 = sshll.u32 [#allocation5], 4
      %s29 = int_to_ptr.vmem [resolvable:$true] %s28
      %34 = dma.hbm_to_vmem [thread:$0]  %s1, 6144, %s29, [#allocation6], 384, 384, 24
    $region9: #{tpu_custom_call.1} parent=1 // pred_fallthru
      _
    // Predicated region
    $region10: #{tpu_custom_call.1} parent=1 // pred_check
      _
    $region11: #{tpu_custom_call.1} parent=1 // pred_check_branch
      %36 = sbr.rel (0) target = $region13
    $region12: #{tpu_custom_call.1} parent=1 // pred_region
      _
    $region13: #{tpu_custom_call.1} parent=1 // pred_fallthru
      _
    // Predicated region
    $region14: #{tpu_custom_call.1} parent=1 // pred_check
      _
    $region15: #{tpu_custom_call.1} parent=1 // pred_check_branch
      %38 = sbr.rel (0) target = $region17
    $region16: #{tpu_custom_call.1} parent=1 // pred_region
      %39 = dma.done [#allocation3], 256
    $region17: #{tpu_custom_call.1} parent=1 // pred_fallthru
      _
    // Predicated region
    $region18: #{tpu_custom_call.1} parent=1 // pred_check
      _
    $region19: #{tpu_custom_call.1} parent=1 // pred_check_branch
      %41 = sbr.rel (0) target = $region21
    $region20: #{tpu_custom_call.1} parent=1 // pred_region
      %42 = dma.done [#allocation6], 6144
    $region21: #{tpu_custom_call.1} parent=1 // pred_fallthru
      _
    %v43 = vld [vmem:[#allocation2] sm:$0xff]
    %v44 = vld [vmem:[#allocation2 + $0x8] sm:$0xff]
    %v45 = vld [vmem:[#allocation5] sm:$0xff]
    %v46 = vld [vmem:[#allocation5 + $0x18] sm:$0xff]
    %v47 = vld [vmem:[#allocation5 + $0x30] sm:$0xff]
    %v48 = vld [vmem:[#allocation5 + $0x48] sm:$0xff]
    %v49 = vld [vmem:[#allocation5 + $0x60] sm:$0xff]
    %v50 = vld [vmem:[#allocation5 + $0x78] sm:$0xff]
    %v51 = vld [vmem:[#allocation5 + $0x90] sm:$0xff]
    %v52 = vld [vmem:[#allocation5 + $0xa8] sm:$0xff]
    %v53 = vld [vmem:[#allocation5 + $0xc0] sm:$0xff]
    %v54 = vld [vmem:[#allocation5 + $0xd8] sm:$0xff]
    %v55 = vld [vmem:[#allocation5 + $0xf0] sm:$0xff]
    %v56 = vld [vmem:[#allocation5 + $0x108] sm:$0xff]
    %v57 = vld [vmem:[#allocation5 + $0x120] sm:$0xff]
    %v58 = vld [vmem:[#allocation5 + $0x138] sm:$0xff]
    %v59 = vld [vmem:[#allocation5 + $0x150] sm:$0xff]
    %v60 = vld [vmem:[#allocation5 + $0x168] sm:$0xff]
    %61 = vmatprep.subr.mxu0 0.0
    %62 = vmatpush1.msra.mxu0 %v45
    %63 = vmatprep.subr.mxu0 0.0
    %64 = vmatpush1.msra.mxu0 %v46
    %65 = vmatprep.subr.mxu0 0.0
    %66 = vmatpush1.msra.mxu0 %v47
    %67 = vmatprep.subr.mxu0 0.0
    %68 = vmatpush1.msra.mxu0 %v48
    %69 = vmatprep.subr.mxu0 0.0
    %70 = vmatpush1.msra.mxu0 %v49
    %71 = vmatprep.subr.mxu0 0.0
    %72 = vmatpush1.msra.mxu0 %v50
    %73 = vmatprep.subr.mxu0 0.0
    %74 = vmatpush1.msra.mxu0 %v51
    %75 = vmatprep.subr.mxu0 0.0
    %76 = vmatpush1.msra.mxu0 %v52
    %77 = vmatprep.subr.mxu0 0.0
    %78 = vmatpush1.msra.mxu0 %v53
    %79 = vmatprep.subr.mxu0 0.0
    %80 = vmatpush1.msra.mxu0 %v54
    %81 = vmatprep.subr.mxu0 0.0
    %82 = vmatpush1.msra.mxu0 %v55
    %83 = vmatprep.subr.mxu0 0.0
    %84 = vmatpush1.msra.mxu0 %v56
    %85 = vmatprep.subr.mxu0 0.0
    %86 = vmatpush1.msra.mxu0 %v57
    %87 = vmatprep.subr.mxu0 0.0
    %88 = vmatpush1.msra.mxu0 %v58
    %89 = vmatprep.subr.mxu0 0.0
    %90 = vmatpush1.msra.mxu0 %v59
    %91 = vmatprep.subr.mxu0 0.0
    %92 = vmatpush1.msra.mxu0 %v60
    %93 = vmatprep.subr.mxu0 0.0
    %94 = vmatpush1.msra.mxu0 0.0
    %95 = vmatprep.subr.mxu0 0.0
    %96 = vmatpush1.msra.mxu0 0.0
    %97 = vmatprep.subr.mxu0 0.0
    %98 = vmatpush1.msra.mxu0 0.0
    %99 = vmatprep.subr.mxu0 0.0
    %100 = vmatpush1.msra.mxu0 0.0
    %101 = vmatprep.subr.mxu0 0.0
    %102 = vmatpush1.msra.mxu0 0.0
    %103 = vmatprep.subr.mxu0 0.0
    %104 = vmatpush1.msra.mxu0 0.0
    %105 = vmatprep.subr.mxu0 0.0
    %106 = vmatpush1.msra.mxu0 0.0
    %107 = vmatprep.subr.mxu0 0.0
    %108 = vmatpush1.msra.mxu0 0.0
    %109 = vmatprep.subr.mxu0 0.0
    %110 = vmatpush1.msra.mxu0 0.0
    %111 = vmatprep.subr.mxu0 0.0
    %112 = vmatpush1.msra.mxu0 0.0
    %113 = vmatprep.subr.mxu0 0.0
    %114 = vmatpush1.msra.mxu0 0.0
    %115 = vmatprep.subr.mxu0 0.0
    %116 = vmatpush1.msra.mxu0 0.0
    %117 = vmatprep.subr.mxu0 0.0
    %118 = vmatpush1.msra.mxu0 0.0
    %119 = vmatprep.subr.mxu0 0.0
    %120 = vmatpush1.msra.mxu0 0.0
    %121 = vmatprep.subr.mxu0 0.0
    %122 = vmatpush1.msra.mxu0 0.0
    %123 = vmatprep.subr.mxu0 0.0
    %124 = vmatpush1.msra.mxu0 0.0
    %125 = vmatprep.mubr.f32.mxu0 0.0
    %126 = vmatmul.mubr.f32.gmra.mrb[0].mxu0 %v43
    %v127 = vpop.f32.mrb[0].mxu0
    %v128 = vadd.f32 0.0, %v127
    %v129 = vpop.f32.mrb[0].mxu0
    %130 = vmatprep.mubr.f32.mxu0 0.0
    %131 = vmatmul.mubr.f32.gmra.mrb[0].mxu0 %v44
    %v132 = vpop.f32.mrb[0].mxu0
    %v133 = vadd.f32 0.0, %v132
    %v134 = vpop.f32.mrb[0].mxu0
    %135 = vdwg.mxu0
    %v136 = vand.u32 2147483647, %v128
    %vm137 = vcmp.le.f32.partialorder %v136, 0.7853982
    %vm138 = vcmp.lt.s32.totalorder %v128, 0
    %v139 = vand.u32 %v128, 2139095040
    %v140 = vshrl.u32 %v139, 23
    %v141 = vsub.s32 %v140, 127
    %v142 = vand.u32 2147483647, %v128
    %v143 = vand.u32 %v142, 8388607
    %v144 = vor.u32 %v143, 8388608
    %v145 = vsub.s32 0, %v144
    %v146 = vadd.s32 %v141, 1
    %vm147 = vcmp.gt.s32.totalorder %v146, 0
    %v148 = vsel %vm147, %v146, 0
    %v149 = vshrl.u32 %v148, 5
    %v150 = vand.u32 %v148, 31
    %v151 = vsub.s32 32, %v150
    %v152 = vshrl.u32 683565275, %v151
    %v153 = vshll.u32 683565275, %v150
    %v154 = vshrl.u32 2475754826, %v151
    %v155 = vor.u32 %v153, %v154
    %v156 = vshll.u32 2475754826, %v150
    %v157 = vshrl.u32 2131351028, %v151
    %v158 = vor.u32 %v156, %v157
    %v159 = vshll.u32 2131351028, %v150
    %v160 = vshrl.u32 2102212464, %v151
    %v161 = vor.u32 %v159, %v160
    %v162 = vshll.u32 2102212464, %v150
    %v163 = vshrl.u32 920167782, %v151
    %v164 = vor.u32 %v162, %v163
    %v165 = vshll.u32 920167782, %v150
    %v166 = vshrl.u32 1326507024, %v151
    %v167 = vor.u32 %v165, %v166
    %vm168 = vcmp.lt.s32.totalorder %v149, 1
    %vm169 = vcmp.lt.s32.totalorder %v149, 2
    %vm170 = vcmp.lt.s32.totalorder %v149, 3
    %vm171 = vcmp.lt.s32.totalorder %v149, 4
    %v172 = vsel %vm168, %v152, %v155
    %v173 = vsel %vm171, %v161, 2102212464
    %v174 = vsel %vm170, %v158, %v173
    %v175 = vsel %vm169, %v172, %v174
    %v176 = vsel %vm168, %v155, %v158
    %v177 = vsel %vm171, %v164, 920167782
    %v178 = vsel %vm170, %v161, %v177
    %v179 = vsel %vm169, %v176, %v178
    %v180 = vsel %vm168, %v158, %v161
    %v181 = vsel %vm171, %v167, 1326507024
    %v182 = vsel %vm170, %v164, %v181
    %v183 = vsel %vm169, %v180, %v182
    %v184 = vshll.u32 %v144, 8
    %v185 = vmul.u32.u64.compose %v184, %v183
    %v186 = vextract.low.u32 %v185
    %v187 = vextract.high.u32 %v185
    %v188 = vmul.u32.u64.compose %v184, %v179
    %v189 = vextract.low.u32 %v188
    %v190 = vextract.high.u32 %v188
    %v191 = vmul.u32 %v184, %v175
    %v192 = vadd.s32 %v187, %v189
    %vm193 = vc.u32 %v187, %v189
    %v194 = vadd.s32 %v190, 1
    %v195 = vsel %vm193, %v194, %v190
    %v196 = vadd.s32 %v191, %v195
    %v197 = vadd.s32 %v196, 536870912
    %v198 = vshrl.u32 %v197, 30
    %v199 = vshll.u32 %v198, 30
    %v200 = vsub.s32 %v196, %v199
    %vm201 = vcmp.lt.s32.totalorder %v200, 0
    %v202 = vsub.s32 0, %v200
    %v203 = vsel %vm201, %v202, %v200
    %v204 = vclz %v203
    %v205 = vsub.s32 %v204, 2
    %vm206 = vcmp.gt.s32.totalorder 0, %v205
    %v207 = vsel %vm206, 0, %v205
    %v208 = vsub.s32 32, %v207
    %v209 = vshll.u32 %v200, %v207
    %v210 = vshrl.u32 %v192, %v208
    %v211 = vor.u32 %v209, %v210
    %v212 = vsub.s32 4294967266, %v207
    %v213 = vadd.s32 %v212, 127
    %v214 = vshll.u32 %v213, 23
    %v215 = vor.u32 4788187, %v214
    %v216 = vand.u32 2147483647, %v215
    %v218 = vcvt.s32.f32 %v211
    %v219 = vmul.f32 %v218, %v216
    %v220 = vxor.u32 %v219, 2147483648
    %v221 = vsel %vm138, %v220, %v219
    %v222 = vsub.s32 4, %v198
    %v223 = vsel %vm138, %v222, %v198
    %v224 = vsel %vm137, %v128, %v221
    %v225 = vsel %vm137, 0, %v223
    %v226 = vcosq.f32.pop %v224
    %v227 = vsinq.f32.pop %v224
    %vm228 = vweird.f32 %v128
    %v229 = vadd.s32 %v225, 3
    %v230 = vand.u32 %v229, 3
    %vm231 = vcmp.lt.s32.totalorder %v230, 2
    %vm232 = vcmp.eq.s32.totalorder %v230, 0
    %v233 = vxor.u32 %v227, 2147483648
    %v234 = vsel %vm232, %v226, %v233
    %vm235 = vcmp.eq.s32.totalorder %v230, 2
    %v236 = vxor.u32 %v226, 2147483648
    %v237 = vsel %vm235, %v236, %v227
    %v238 = vsel %vm231, %v234, %v237
    %v239 = vsel %vm228, nan, %v238
    %v240 = vand.u32 2147483647, %v133
    %vm241 = vcmp.le.f32.partialorder %v240, 0.7853982
    %vm242 = vcmp.lt.s32.totalorder %v133, 0
    %v243 = vand.u32 %v133, 2139095040
    %v244 = vshrl.u32 %v243, 23
    %v245 = vsub.s32 %v244, 127
    %v246 = vand.u32 2147483647, %v133
    %v247 = vand.u32 %v246, 8388607
    %v248 = vor.u32 %v247, 8388608
    %v249 = vsub.s32 0, %v248
    %v250 = vadd.s32 %v245, 1
    %vm251 = vcmp.gt.s32.totalorder %v250, 0
    %v252 = vsel %vm251, %v250, 0
    %v253 = vshrl.u32 %v252, 5
    %v254 = vand.u32 %v252, 31
    %v255 = vsub.s32 32, %v254
    %v256 = vshrl.u32 683565275, %v255
    %v257 = vshll.u32 683565275, %v254
    %v258 = vshrl.u32 2475754826, %v255
    %v259 = vor.u32 %v257, %v258
    %v260 = vshll.u32 2475754826, %v254
    %v261 = vshrl.u32 2131351028, %v255
    %v262 = vor.u32 %v260, %v261
    %v263 = vshll.u32 2131351028, %v254
    %v264 = vshrl.u32 2102212464, %v255
    %v265 = vor.u32 %v263, %v264
    %v266 = vshll.u32 2102212464, %v254
    %v267 = vshrl.u32 920167782, %v255
    %v268 = vor.u32 %v266, %v267
    %v269 = vshll.u32 920167782, %v254
    %v270 = vshrl.u32 1326507024, %v255
    %v271 = vor.u32 %v269, %v270
    %vm272 = vcmp.lt.s32.totalorder %v253, 1
    %vm273 = vcmp.lt.s32.totalorder %v253, 2
    %vm274 = vcmp.lt.s32.totalorder %v253, 3
    %vm275 = vcmp.lt.s32.totalorder %v253, 4
    %v276 = vsel %vm272, %v256, %v259
    %v277 = vsel %vm275, %v265, 2102212464
    %v278 = vsel %vm274, %v262, %v277
    %v279 = vsel %vm273, %v276, %v278
    %v280 = vsel %vm272, %v259, %v262
    %v281 = vsel %vm275, %v268, 920167782
    %v282 = vsel %vm274, %v265, %v281
    %v283 = vsel %vm273, %v280, %v282
    %v284 = vsel %vm272, %v262, %v265
    %v285 = vsel %vm275, %v271, 1326507024
    %v286 = vsel %vm274, %v268, %v285
    %v287 = vsel %vm273, %v284, %v286
    %v288 = vshll.u32 %v248, 8
    %v289 = vmul.u32.u64.compose %v288, %v287
    %v290 = vextract.low.u32 %v289
    %v291 = vextract.high.u32 %v289
    %v292 = vmul.u32.u64.compose %v288, %v283
    %v293 = vextract.low.u32 %v292
    %v294 = vextract.high.u32 %v292
    %v295 = vmul.u32 %v288, %v279
    %v296 = vadd.s32 %v291, %v293
    %vm297 = vc.u32 %v291, %v293
    %v298 = vadd.s32 %v294, 1
    %v299 = vsel %vm297, %v298, %v294
    %v300 = vadd.s32 %v295, %v299
    %v301 = vadd.s32 %v300, 536870912
    %v302 = vshrl.u32 %v301, 30
    %v303 = vshll.u32 %v302, 30
    %v304 = vsub.s32 %v300, %v303
    %vm305 = vcmp.lt.s32.totalorder %v304, 0
    %v306 = vsub.s32 0, %v304
    %v307 = vsel %vm305, %v306, %v304
    %v308 = vclz %v307
    %v309 = vsub.s32 %v308, 2
    %vm310 = vcmp.gt.s32.totalorder 0, %v309
    %v311 = vsel %vm310, 0, %v309
    %v312 = vsub.s32 32, %v311
    %v313 = vshll.u32 %v304, %v311
    %v314 = vshrl.u32 %v296, %v312
    %v315 = vor.u32 %v313, %v314
    %v316 = vsub.s32 4294967266, %v311
    %v317 = vadd.s32 %v316, 127
    %v318 = vshll.u32 %v317, 23
    %v319 = vor.u32 4788187, %v318
    %v320 = vand.u32 2147483647, %v319
    %v322 = vcvt.s32.f32 %v315
    %v323 = vmul.f32 %v322, %v320
    %v324 = vxor.u32 %v323, 2147483648
    %v325 = vsel %vm242, %v324, %v323
    %v326 = vsub.s32 4, %v302
    %v327 = vsel %vm242, %v326, %v302
    %v328 = vsel %vm241, %v133, %v325
    %v329 = vsel %vm241, 0, %v327
    %v330 = vcosq.f32.pop %v328
    %v331 = vsinq.f32.pop %v328
    %vm332 = vweird.f32 %v133
    %v333 = vadd.s32 %v329, 3
    %v334 = vand.u32 %v333, 3
    %vm335 = vcmp.lt.s32.totalorder %v334, 2
    %vm336 = vcmp.eq.s32.totalorder %v334, 0
    %v337 = vxor.u32 %v331, 2147483648
    %v338 = vsel %vm336, %v330, %v337
    %vm339 = vcmp.eq.s32.totalorder %v334, 2
    %v340 = vxor.u32 %v330, 2147483648
    %v341 = vsel %vm339, %v340, %v331
    %v342 = vsel %vm335, %v338, %v341
    %v343 = vsel %vm332, nan, %v342
    %v344 = vand.u32 2147483647, %v239
    %vm345 = vcmp.le.f32.partialorder %v344, 0.7853982
    %vm346 = vcmp.lt.s32.totalorder %v239, 0
    %v347 = vand.u32 %v239, 2139095040
    %v348 = vshrl.u32 %v347, 23
    %v349 = vsub.s32 %v348, 127
    %v350 = vand.u32 2147483647, %v239
    %v351 = vand.u32 %v350, 8388607
    %v352 = vor.u32 %v351, 8388608
    %v353 = vsub.s32 0, %v352
    %v354 = vadd.s32 %v349, 1
    %vm355 = vcmp.gt.s32.totalorder %v354, 0
    %v356 = vsel %vm355, %v354, 0
    %v357 = vshrl.u32 %v356, 5
    %v358 = vand.u32 %v356, 31
    %v359 = vsub.s32 32, %v358
    %v360 = vshrl.u32 683565275, %v359
    %v361 = vshll.u32 683565275, %v358
    %v362 = vshrl.u32 2475754826, %v359
    %v363 = vor.u32 %v361, %v362
    %v364 = vshll.u32 2475754826, %v358
    %v365 = vshrl.u32 2131351028, %v359
    %v366 = vor.u32 %v364, %v365
    %v367 = vshll.u32 2131351028, %v358
    %v368 = vshrl.u32 2102212464, %v359
    %v369 = vor.u32 %v367, %v368
    %v370 = vshll.u32 2102212464, %v358
    %v371 = vshrl.u32 920167782, %v359
    %v372 = vor.u32 %v370, %v371
    %v373 = vshll.u32 920167782, %v358
    %v374 = vshrl.u32 1326507024, %v359
    %v375 = vor.u32 %v373, %v374
    %vm376 = vcmp.lt.s32.totalorder %v357, 1
    %vm377 = vcmp.lt.s32.totalorder %v357, 2
    %vm378 = vcmp.lt.s32.totalorder %v357, 3
    %vm379 = vcmp.lt.s32.totalorder %v357, 4
    %v380 = vsel %vm376, %v360, %v363
    %v381 = vsel %vm379, %v369, 2102212464
    %v382 = vsel %vm378, %v366, %v381
    %v383 = vsel %vm377, %v380, %v382
    %v384 = vsel %vm376, %v363, %v366
    %v385 = vsel %vm379, %v372, 920167782
    %v386 = vsel %vm378, %v369, %v385
    %v387 = vsel %vm377, %v384, %v386
    %v388 = vsel %vm376, %v366, %v369
    %v389 = vsel %vm379, %v375, 1326507024
    %v390 = vsel %vm378, %v372, %v389
    %v391 = vsel %vm377, %v388, %v390
    %v392 = vshll.u32 %v352, 8
    %v393 = vmul.u32.u64.compose %v392, %v391
    %v394 = vextract.low.u32 %v393
    %v395 = vextract.high.u32 %v393
    %v396 = vmul.u32.u64.compose %v392, %v387
    %v397 = vextract.low.u32 %v396
    %v398 = vextract.high.u32 %v396
    %v399 = vmul.u32 %v392, %v383
    %v400 = vadd.s32 %v395, %v397
    %vm401 = vc.u32 %v395, %v397
    %v402 = vadd.s32 %v398, 1
    %v403 = vsel %vm401, %v402, %v398
    %v404 = vadd.s32 %v399, %v403
    %v405 = vadd.s32 %v404, 536870912
    %v406 = vshrl.u32 %v405, 30
    %v407 = vshll.u32 %v406, 30
    %v408 = vsub.s32 %v404, %v407
    %vm409 = vcmp.lt.s32.totalorder %v408, 0
    %v410 = vsub.s32 0, %v408
    %v411 = vsel %vm409, %v410, %v408
    %v412 = vclz %v411
    %v413 = vsub.s32 %v412, 2
    %vm414 = vcmp.gt.s32.totalorder 0, %v413
    %v415 = vsel %vm414, 0, %v413
    %v416 = vsub.s32 32, %v415
    %v417 = vshll.u32 %v408, %v415
    %v418 = vshrl.u32 %v400, %v416
    %v419 = vor.u32 %v417, %v418
    %v420 = vsub.s32 4294967266, %v415
    %v421 = vadd.s32 %v420, 127
    %v422 = vshll.u32 %v421, 23
    %v423 = vor.u32 4788187, %v422
    %v424 = vand.u32 2147483647, %v423
    %v426 = vcvt.s32.f32 %v419
    %v427 = vmul.f32 %v426, %v424
    %v428 = vxor.u32 %v427, 2147483648
    %v429 = vsel %vm346, %v428, %v427
    %v430 = vsub.s32 4, %v406
    %v431 = vsel %vm346, %v430, %v406
    %v432 = vsel %vm345, %v239, %v429
    %v433 = vsel %vm345, 0, %v431
    %v434 = vcosq.f32.pop %v432
    %v435 = vsinq.f32.pop %v432
    %vm436 = vweird.f32 %v239
    %v437 = vand.u32 %v433, 3
    %vm438 = vcmp.lt.s32.totalorder %v437, 2
    %vm439 = vcmp.eq.s32.totalorder %v437, 0
    %v440 = vxor.u32 %v435, 2147483648
    %v441 = vsel %vm439, %v434, %v440
    %vm442 = vcmp.eq.s32.totalorder %v437, 2
    %v443 = vxor.u32 %v434, 2147483648
    %v444 = vsel %vm442, %v443, %v435
    %v445 = vsel %vm438, %v441, %v444
    %v446 = vsel %vm436, nan, %v445
    %v447 = vand.u32 2147483647, %v343
    %vm448 = vcmp.le.f32.partialorder %v447, 0.7853982
    %vm449 = vcmp.lt.s32.totalorder %v343, 0
    %v450 = vand.u32 %v343, 2139095040
    %v451 = vshrl.u32 %v450, 23
    %v452 = vsub.s32 %v451, 127
    %v453 = vand.u32 2147483647, %v343
    %v454 = vand.u32 %v453, 8388607
    %v455 = vor.u32 %v454, 8388608
    %v456 = vsub.s32 0, %v455
    %v457 = vadd.s32 %v452, 1
    %vm458 = vcmp.gt.s32.totalorder %v457, 0
    %v459 = vsel %vm458, %v457, 0
    %v460 = vshrl.u32 %v459, 5
    %v461 = vand.u32 %v459, 31
    %v462 = vsub.s32 32, %v461
    %v463 = vshrl.u32 683565275, %v462
    %v464 = vshll.u32 683565275, %v461
    %v465 = vshrl.u32 2475754826, %v462
    %v466 = vor.u32 %v464, %v465
    %v467 = vshll.u32 2475754826, %v461
    %v468 = vshrl.u32 2131351028, %v462
    %v469 = vor.u32 %v467, %v468
    %v470 = vshll.u32 2131351028, %v461
    %v471 = vshrl.u32 2102212464, %v462
    %v472 = vor.u32 %v470, %v471
    %v473 = vshll.u32 2102212464, %v461
    %v474 = vshrl.u32 920167782, %v462
    %v475 = vor.u32 %v473, %v474
    %v476 = vshll.u32 920167782, %v461
    %v477 = vshrl.u32 1326507024, %v462
    %v478 = vor.u32 %v476, %v477
    %vm479 = vcmp.lt.s32.totalorder %v460, 1
    %vm480 = vcmp.lt.s32.totalorder %v460, 2
    %vm481 = vcmp.lt.s32.totalorder %v460, 3
    %vm482 = vcmp.lt.s32.totalorder %v460, 4
    %v483 = vsel %vm479, %v463, %v466
    %v484 = vsel %vm482, %v472, 2102212464
    %v485 = vsel %vm481, %v469, %v484
    %v486 = vsel %vm480, %v483, %v485
    %v487 = vsel %vm479, %v466, %v469
    %v488 = vsel %vm482, %v475, 920167782
    %v489 = vsel %vm481, %v472, %v488
    %v490 = vsel %vm480, %v487, %v489
    %v491 = vsel %vm479, %v469, %v472
    %v492 = vsel %vm482, %v478, 1326507024
    %v493 = vsel %vm481, %v475, %v492
    %v494 = vsel %vm480, %v491, %v493
    %v495 = vshll.u32 %v455, 8
    %v496 = vmul.u32.u64.compose %v495, %v494
    %v497 = vextract.low.u32 %v496
    %v498 = vextract.high.u32 %v496
    %v499 = vmul.u32.u64.compose %v495, %v490
    %v500 = vextract.low.u32 %v499
    %v501 = vextract.high.u32 %v499
    %v502 = vmul.u32 %v495, %v486
    %v503 = vadd.s32 %v498, %v500
    %vm504 = vc.u32 %v498, %v500
    %v505 = vadd.s32 %v501, 1
    %v506 = vsel %vm504, %v505, %v501
    %v507 = vadd.s32 %v502, %v506
    %v508 = vadd.s32 %v507, 536870912
    %v509 = vshrl.u32 %v508, 30
    %v510 = vshll.u32 %v509, 30
    %v511 = vsub.s32 %v507, %v510
    %vm512 = vcmp.lt.s32.totalorder %v511, 0
    %v513 = vsub.s32 0, %v511
    %v514 = vsel %vm512, %v513, %v511
    %v515 = vclz %v514
    %v516 = vsub.s32 %v515, 2
    %vm517 = vcmp.gt.s32.totalorder 0, %v516
    %v518 = vsel %vm517, 0, %v516
    %v519 = vsub.s32 32, %v518
    %v520 = vshll.u32 %v511, %v518
    %v521 = vshrl.u32 %v503, %v519
    %v522 = vor.u32 %v520, %v521
    %v523 = vsub.s32 4294967266, %v518
    %v524 = vadd.s32 %v523, 127
    %v525 = vshll.u32 %v524, 23
    %v526 = vor.u32 4788187, %v525
    %v527 = vand.u32 2147483647, %v526
    %v529 = vcvt.s32.f32 %v522
    %v530 = vmul.f32 %v529, %v527
    %v531 = vxor.u32 %v530, 2147483648
    %v532 = vsel %vm449, %v531, %v530
    %v533 = vsub.s32 4, %v509
    %v534 = vsel %vm449, %v533, %v509
    %v535 = vsel %vm448, %v343, %v532
    %v536 = vsel %vm448, 0, %v534
    %v537 = vcosq.f32.pop %v535
    %v538 = vsinq.f32.pop %v535
    %vm539 = vweird.f32 %v343
    %v540 = vand.u32 %v536, 3
    %vm541 = vcmp.lt.s32.totalorder %v540, 2
    %vm542 = vcmp.eq.s32.totalorder %v540, 0
    %v543 = vxor.u32 %v538, 2147483648
    %v544 = vsel %vm542, %v537, %v543
    %vm545 = vcmp.eq.s32.totalorder %v540, 2
    %v546 = vxor.u32 %v537, 2147483648
    %v547 = vsel %vm545, %v546, %v538
    %v548 = vsel %vm541, %v544, %v547
    %v549 = vsel %vm539, nan, %v548
    %v550 = vand.u32 2147483647, %v239
    %vm551 = vcmp.le.f32.partialorder %v550, 0.7853982
    %vm552 = vcmp.lt.s32.totalorder %v239, 0
    %v553 = vand.u32 %v239, 2139095040
    %v554 = vshrl.u32 %v553, 23
    %v555 = vsub.s32 %v554, 127
    %v556 = vand.u32 2147483647, %v239
    %v557 = vand.u32 %v556, 8388607
    %v558 = vor.u32 %v557, 8388608
    %v559 = vsub.s32 0, %v558
    %v560 = vadd.s32 %v555, 1
    %vm561 = vcmp.gt.s32.totalorder %v560, 0
    %v562 = vsel %vm561, %v560, 0
    %v563 = vshrl.u32 %v562, 5
    %v564 = vand.u32 %v562, 31
    %v565 = vsub.s32 32, %v564
    %v566 = vshrl.u32 683565275, %v565
    %v567 = vshll.u32 683565275, %v564
    %v568 = vshrl.u32 2475754826, %v565
    %v569 = vor.u32 %v567, %v568
    %v570 = vshll.u32 2475754826, %v564
    %v571 = vshrl.u32 2131351028, %v565
    %v572 = vor.u32 %v570, %v571
    %v573 = vshll.u32 2131351028, %v564
    %v574 = vshrl.u32 2102212464, %v565
    %v575 = vor.u32 %v573, %v574
    %v576 = vshll.u32 2102212464, %v564
    %v577 = vshrl.u32 920167782, %v565
    %v578 = vor.u32 %v576, %v577
    %v579 = vshll.u32 920167782, %v564
    %v580 = vshrl.u32 1326507024, %v565
    %v581 = vor.u32 %v579, %v580
    %vm582 = vcmp.lt.s32.totalorder %v563, 1
    %vm583 = vcmp.lt.s32.totalorder %v563, 2
    %vm584 = vcmp.lt.s32.totalorder %v563, 3
    %vm585 = vcmp.lt.s32.totalorder %v563, 4
    %v586 = vsel %vm582, %v566, %v569
    %v587 = vsel %vm585, %v575, 2102212464
    %v588 = vsel %vm584, %v572, %v587
    %v589 = vsel %vm583, %v586, %v588
    %v590 = vsel %vm582, %v569, %v572
    %v591 = vsel %vm585, %v578, 920167782
    %v592 = vsel %vm584, %v575, %v591
    %v593 = vsel %vm583, %v590, %v592
    %v594 = vsel %vm582, %v572, %v575
    %v595 = vsel %vm585, %v581, 1326507024
    %v596 = vsel %vm584, %v578, %v595
    %v597 = vsel %vm583, %v594, %v596
    %v598 = vshll.u32 %v558, 8
    %v599 = vmul.u32.u64.compose %v598, %v597
    %v600 = vextract.low.u32 %v599
    %v601 = vextract.high.u32 %v599
    %v602 = vmul.u32.u64.compose %v598, %v593
    %v603 = vextract.low.u32 %v602
    %v604 = vextract.high.u32 %v602
    %v605 = vmul.u32 %v598, %v589
    %v606 = vadd.s32 %v601, %v603
    %vm607 = vc.u32 %v601, %v603
    %v608 = vadd.s32 %v604, 1
    %v609 = vsel %vm607, %v608, %v604
    %v610 = vadd.s32 %v605, %v609
    %v611 = vadd.s32 %v610, 536870912
    %v612 = vshrl.u32 %v611, 30
    %v613 = vshll.u32 %v612, 30
    %v614 = vsub.s32 %v610, %v613
    %vm615 = vcmp.lt.s32.totalorder %v614, 0
    %v616 = vsub.s32 0, %v614
    %v617 = vsel %vm615, %v616, %v614
    %v618 = vclz %v617
    %v619 = vsub.s32 %v618, 2
    %vm620 = vcmp.gt.s32.totalorder 0, %v619
    %v621 = vsel %vm620, 0, %v619
    %v622 = vsub.s32 32, %v621
    %v623 = vshll.u32 %v614, %v621
    %v624 = vshrl.u32 %v606, %v622
    %v625 = vor.u32 %v623, %v624
    %v626 = vsub.s32 4294967266, %v621
    %v627 = vadd.s32 %v626, 127
    %v628 = vshll.u32 %v627, 23
    %v629 = vor.u32 4788187, %v628
    %v630 = vand.u32 2147483647, %v629
    %v632 = vcvt.s32.f32 %v625
    %v633 = vmul.f32 %v632, %v630
    %v634 = vxor.u32 %v633, 2147483648
    %v635 = vsel %vm552, %v634, %v633
    %v636 = vsub.s32 4, %v612
    %v637 = vsel %vm552, %v636, %v612
    %v638 = vsel %vm551, %v239, %v635
    %v639 = vsel %vm551, 0, %v637
    %v640 = vcosq.f32.pop %v638
    %v641 = vsinq.f32.pop %v638
    %vm642 = vweird.f32 %v239
    %v643 = vadd.s32 %v639, 3
    %v644 = vand.u32 %v643, 3
    %vm645 = vcmp.lt.s32.totalorder %v644, 2
    %vm646 = vcmp.eq.s32.totalorder %v644, 0
    %v647 = vxor.u32 %v641, 2147483648
    %v648 = vsel %vm646, %v640, %v647
    %vm649 = vcmp.eq.s32.totalorder %v644, 2
    %v650 = vxor.u32 %v640, 2147483648
    %v651 = vsel %vm649, %v650, %v641
    %v652 = vsel %vm645, %v648, %v651
    %v653 = vsel %vm642, nan, %v652
    %v654 = vand.u32 2147483647, %v343
    %vm655 = vcmp.le.f32.partialorder %v654, 0.7853982
    %vm656 = vcmp.lt.s32.totalorder %v343, 0
    %v657 = vand.u32 %v343, 2139095040
    %v658 = vshrl.u32 %v657, 23
    %v659 = vsub.s32 %v658, 127
    %v660 = vand.u32 2147483647, %v343
    %v661 = vand.u32 %v660, 8388607
    %v662 = vor.u32 %v661, 8388608
    %v663 = vsub.s32 0, %v662
    %v664 = vadd.s32 %v659, 1
    %vm665 = vcmp.gt.s32.totalorder %v664, 0
    %v666 = vsel %vm665, %v664, 0
    %v667 = vshrl.u32 %v666, 5
    %v668 = vand.u32 %v666, 31
    %v669 = vsub.s32 32, %v668
    %v670 = vshrl.u32 683565275, %v669
    %v671 = vshll.u32 683565275, %v668
    %v672 = vshrl.u32 2475754826, %v669
    %v673 = vor.u32 %v671, %v672
    %v674 = vshll.u32 2475754826, %v668
    %v675 = vshrl.u32 2131351028, %v669
    %v676 = vor.u32 %v674, %v675
    %v677 = vshll.u32 2131351028, %v668
    %v678 = vshrl.u32 2102212464, %v669
    %v679 = vor.u32 %v677, %v678
    %v680 = vshll.u32 2102212464, %v668
    %v681 = vshrl.u32 920167782, %v669
    %v682 = vor.u32 %v680, %v681
    %v683 = vshll.u32 920167782, %v668
    %v684 = vshrl.u32 1326507024, %v669
    %v685 = vor.u32 %v683, %v684
    %vm686 = vcmp.lt.s32.totalorder %v667, 1
    %vm687 = vcmp.lt.s32.totalorder %v667, 2
    %vm688 = vcmp.lt.s32.totalorder %v667, 3
    %vm689 = vcmp.lt.s32.totalorder %v667, 4
    %v690 = vsel %vm686, %v670, %v673
    %v691 = vsel %vm689, %v679, 2102212464
    %v692 = vsel %vm688, %v676, %v691
    %v693 = vsel %vm687, %v690, %v692
    %v694 = vsel %vm686, %v673, %v676
    %v695 = vsel %vm689, %v682, 920167782
    %v696 = vsel %vm688, %v679, %v695
    %v697 = vsel %vm687, %v694, %v696
    %v698 = vsel %vm686, %v676, %v679
    %v699 = vsel %vm689, %v685, 1326507024
    %v700 = vsel %vm688, %v682, %v699
    %v701 = vsel %vm687, %v698, %v700
    %v702 = vshll.u32 %v662, 8
    %v703 = vmul.u32.u64.compose %v702, %v701
    %v704 = vextract.low.u32 %v703
    %v705 = vextract.high.u32 %v703
    %v706 = vmul.u32.u64.compose %v702, %v697
    %v707 = vextract.low.u32 %v706
    %v708 = vextract.high.u32 %v706
    %v709 = vmul.u32 %v702, %v693
    %v710 = vadd.s32 %v705, %v707
    %vm711 = vc.u32 %v705, %v707
    %v712 = vadd.s32 %v708, 1
    %v713 = vsel %vm711, %v712, %v708
    %v714 = vadd.s32 %v709, %v713
    %v715 = vadd.s32 %v714, 536870912
    %v716 = vshrl.u32 %v715, 30
    %v717 = vshll.u32 %v716, 30
    %v718 = vsub.s32 %v714, %v717
    %vm719 = vcmp.lt.s32.totalorder %v718, 0
    %v720 = vsub.s32 0, %v718
    %v721 = vsel %vm719, %v720, %v718
    %v722 = vclz %v721
    %v723 = vsub.s32 %v722, 2
    %vm724 = vcmp.gt.s32.totalorder 0, %v723
    %v725 = vsel %vm724, 0, %v723
    %v726 = vsub.s32 32, %v725
    %v727 = vshll.u32 %v718, %v725
    %v728 = vshrl.u32 %v710, %v726
    %v729 = vor.u32 %v727, %v728
    %v730 = vsub.s32 4294967266, %v725
    %v731 = vadd.s32 %v730, 127
    %v732 = vshll.u32 %v731, 23
    %v733 = vor.u32 4788187, %v732
    %v734 = vand.u32 2147483647, %v733
    %v736 = vcvt.s32.f32 %v729
    %v737 = vmul.f32 %v736, %v734
    %v738 = vxor.u32 %v737, 2147483648
    %v739 = vsel %vm656, %v738, %v737
    %v740 = vsub.s32 4, %v716
    %v741 = vsel %vm656, %v740, %v716
    %v742 = vsel %vm655, %v343, %v739
    %v743 = vsel %vm655, 0, %v741
    %v744 = vcosq.f32.pop %v742
    %v745 = vsinq.f32.pop %v742
    %vm746 = vweird.f32 %v343
    %v747 = vadd.s32 %v743, 3
    %v748 = vand.u32 %v747, 3
    %vm749 = vcmp.lt.s32.totalorder %v748, 2
    %vm750 = vcmp.eq.s32.totalorder %v748, 0
    %v751 = vxor.u32 %v745, 2147483648
    %v752 = vsel %vm750, %v744, %v751
    %vm753 = vcmp.eq.s32.totalorder %v748, 2
    %v754 = vxor.u32 %v744, 2147483648
    %v755 = vsel %vm753, %v754, %v745
    %v756 = vsel %vm749, %v752, %v755
    %v757 = vsel %vm746, nan, %v756
    %v758 = vld [vmem:[#allocation5 + $0x8] sm:$0xff]
    %v759 = vld [vmem:[#allocation5 + $0x20] sm:$0xff]
    %v760 = vld [vmem:[#allocation5 + $0x38] sm:$0xff]
    %v761 = vld [vmem:[#allocation5 + $0x50] sm:$0xff]
    %v762 = vld [vmem:[#allocation5 + $0x68] sm:$0xff]
    %v763 = vld [vmem:[#allocation5 + $0x80] sm:$0xff]
    %v764 = vld [vmem:[#allocation5 + $0x98] sm:$0xff]
    %v765 = vld [vmem:[#allocation5 + $0xb0] sm:$0xff]
    %v766 = vld [vmem:[#allocation5 + $0xc8] sm:$0xff]
    %v767 = vld [vmem:[#allocation5 + $0xe0] sm:$0xff]
    %v768 = vld [vmem:[#allocation5 + $0xf8] sm:$0xff]
    %v769 = vld [vmem:[#allocation5 + $0x110] sm:$0xff]
    %v770 = vld [vmem:[#allocation5 + $0x128] sm:$0xff]
    %v771 = vld [vmem:[#allocation5 + $0x140] sm:$0xff]
    %v772 = vld [vmem:[#allocation5 + $0x158] sm:$0xff]
    %v773 = vld [vmem:[#allocation5 + $0x170] sm:$0xff]
    %774 = vmatprep.subr.mxu0 0.0
    %775 = vmatpush1.msra.mxu0 %v758
    %776 = vmatprep.subr.mxu0 0.0
    %777 = vmatpush1.msra.mxu0 %v759
    %778 = vmatprep.subr.mxu0 0.0
    %779 = vmatpush1.msra.mxu0 %v760
    %780 = vmatprep.subr.mxu0 0.0
    %781 = vmatpush1.msra.mxu0 %v761
    %782 = vmatprep.subr.mxu0 0.0
    %783 = vmatpush1.msra.mxu0 %v762
    %784 = vmatprep.subr.mxu0 0.0
    %785 = vmatpush1.msra.mxu0 %v763
    %786 = vmatprep.subr.mxu0 0.0
    %787 = vmatpush1.msra.mxu0 %v764
    %788 = vmatprep.subr.mxu0 0.0
    %789 = vmatpush1.msra.mxu0 %v765
    %790 = vmatprep.subr.mxu0 0.0
    %791 = vmatpush1.msra.mxu0 %v766
    %792 = vmatprep.subr.mxu0 0.0
    %793 = vmatpush1.msra.mxu0 %v767
    %794 = vmatprep.subr.mxu0 0.0
    %795 = vmatpush1.msra.mxu0 %v768
    %796 = vmatprep.subr.mxu0 0.0
    %797 = vmatpush1.msra.mxu0 %v769
    %798 = vmatprep.subr.mxu0 0.0
    %799 = vmatpush1.msra.mxu0 %v770
    %800 = vmatprep.subr.mxu0 0.0
    %801 = vmatpush1.msra.mxu0 %v771
    %802 = vmatprep.subr.mxu0 0.0
    %803 = vmatpush1.msra.mxu0 %v772
    %804 = vmatprep.subr.mxu0 0.0
    %805 = vmatpush1.msra.mxu0 %v773
    %806 = vmatprep.subr.mxu0 0.0
    %807 = vmatpush1.msra.mxu0 0.0
    %808 = vmatprep.subr.mxu0 0.0
    %809 = vmatpush1.msra.mxu0 0.0
    %810 = vmatprep.subr.mxu0 0.0
    %811 = vmatpush1.msra.mxu0 0.0
    %812 = vmatprep.subr.mxu0 0.0
    %813 = vmatpush1.msra.mxu0 0.0
    %814 = vmatprep.subr.mxu0 0.0
    %815 = vmatpush1.msra.mxu0 0.0
    %816 = vmatprep.subr.mxu0 0.0
    %817 = vmatpush1.msra.mxu0 0.0
    %818 = vmatprep.subr.mxu0 0.0
    %819 = vmatpush1.msra.mxu0 0.0
    %820 = vmatprep.subr.mxu0 0.0
    %821 = vmatpush1.msra.mxu0 0.0
    %822 = vmatprep.subr.mxu0 0.0
    %823 = vmatpush1.msra.mxu0 0.0
    %824 = vmatprep.subr.mxu0 0.0
    %825 = vmatpush1.msra.mxu0 0.0
    %826 = vmatprep.subr.mxu0 0.0
    %827 = vmatpush1.msra.mxu0 0.0
    %828 = vmatprep.subr.mxu0 0.0
    %829 = vmatpush1.msra.mxu0 0.0
    %830 = vmatprep.subr.mxu0 0.0
    %831 = vmatpush1.msra.mxu0 0.0
    %832 = vmatprep.subr.mxu0 0.0
    %833 = vmatpush1.msra.mxu0 0.0
    %834 = vmatprep.subr.mxu0 0.0
    %835 = vmatpush1.msra.mxu0 0.0
    %836 = vmatprep.subr.mxu0 0.0
    %837 = vmatpush1.msra.mxu0 0.0
    %838 = vmatprep.mubr.f32.mxu0 0.0
    %839 = vmatmul.mubr.f32.gmra.mrb[0].mxu0 %v43
    %v840 = vpop.f32.mrb[0].mxu0
    %v841 = vadd.f32 0.0, %v840
    %v842 = vpop.f32.mrb[0].mxu0
    %843 = vmatprep.mubr.f32.mxu0 0.0
    %844 = vmatmul.mubr.f32.gmra.mrb[0].mxu0 %v44
    %v845 = vpop.f32.mrb[0].mxu0
    %v846 = vadd.f32 0.0, %v845
    %v847 = vpop.f32.mrb[0].mxu0
    %848 = vdwg.mxu0
    %850 = vset.pattern.permute.xlu0 32
    %851 = vperm.xlu0 %850, %v446
    %v852 = vpop.permute.xlu0 %851
    %855 = vset.pattern.permute.xlu0 32
    %856 = vperm.xlu0 %855, %v549
    %v857 = vpop.permute.xlu0 %856
    %v859 = vmul.f32 %v852, %v841
    %v860 = vmul.f32 %v857, %v846
    %v861 = vadd.f32 %v128, %v859
    %v862 = vadd.f32 %v133, %v860
    %v863 = vld [vmem:[%s2] sm:$0x1]
    %v865 = vlaneseq
    %v866 = vshrl.u32 %v865, 7
    %v867 = vsub.s32 0, %v866
    %v868 = vrot.slane %v863, %v867
    %v870 = vadd.f32 %v861, %v868
    %v871 = vadd.f32 %v862, %v868
    %v872 = vld [vmem:[#allocation5 + $0x10] sm:$0xff]
    %v873 = vld [vmem:[#allocation5 + $0x28] sm:$0xff]
    %v874 = vld [vmem:[#allocation5 + $0x40] sm:$0xff]
    %v875 = vld [vmem:[#allocation5 + $0x58] sm:$0xff]
    %v876 = vld [vmem:[#allocation5 + $0x70] sm:$0xff]
    %v877 = vld [vmem:[#allocation5 + $0x88] sm:$0xff]
    %v878 = vld [vmem:[#allocation5 + $0xa0] sm:$0xff]
    %v879 = vld [vmem:[#allocation5 + $0xb8] sm:$0xff]
    %v880 = vld [vmem:[#allocation5 + $0xd0] sm:$0xff]
    %v881 = vld [vmem:[#allocation5 + $0xe8] sm:$0xff]
    %v882 = vld [vmem:[#allocation5 + $0x100] sm:$0xff]
    %v883 = vld [vmem:[#allocation5 + $0x118] sm:$0xff]
    %v884 = vld [vmem:[#allocation5 + $0x130] sm:$0xff]
    %v885 = vld [vmem:[#allocation5 + $0x148] sm:$0xff]
    %v886 = vld [vmem:[#allocation5 + $0x160] sm:$0xff]
    %v887 = vld [vmem:[#allocation5 + $0x178] sm:$0xff]
    %888 = vmatprep.subr.mxu0 0.0
    %889 = vmatpush1.msra.mxu0 %v872
    %890 = vmatprep.subr.mxu0 0.0
    %891 = vmatpush1.msra.mxu0 %v873
    %892 = vmatprep.subr.mxu0 0.0
    %893 = vmatpush1.msra.mxu0 %v874
    %894 = vmatprep.subr.mxu0 0.0
    %895 = vmatpush1.msra.mxu0 %v875
    %896 = vmatprep.subr.mxu0 0.0
    %897 = vmatpush1.msra.mxu0 %v876
    %898 = vmatprep.subr.mxu0 0.0
    %899 = vmatpush1.msra.mxu0 %v877
    %900 = vmatprep.subr.mxu0 0.0
    %901 = vmatpush1.msra.mxu0 %v878
    %902 = vmatprep.subr.mxu0 0.0
    %903 = vmatpush1.msra.mxu0 %v879
    %904 = vmatprep.subr.mxu0 0.0
    %905 = vmatpush1.msra.mxu0 %v880
    %906 = vmatprep.subr.mxu0 0.0
    %907 = vmatpush1.msra.mxu0 %v881
    %908 = vmatprep.subr.mxu0 0.0
    %909 = vmatpush1.msra.mxu0 %v882
    %910 = vmatprep.subr.mxu0 0.0
    %911 = vmatpush1.msra.mxu0 %v883
    %912 = vmatprep.subr.mxu0 0.0
    %913 = vmatpush1.msra.mxu0 %v884
    %914 = vmatprep.subr.mxu0 0.0
    %915 = vmatpush1.msra.mxu0 %v885
    %916 = vmatprep.subr.mxu0 0.0
    %917 = vmatpush1.msra.mxu0 %v886
    %918 = vmatprep.subr.mxu0 0.0
    %919 = vmatpush1.msra.mxu0 %v887
    %920 = vmatprep.subr.mxu0 0.0
    %921 = vmatpush1.msra.mxu0 0.0
    %922 = vmatprep.subr.mxu0 0.0
    %923 = vmatpush1.msra.mxu0 0.0
    %924 = vmatprep.subr.mxu0 0.0
    %925 = vmatpush1.msra.mxu0 0.0
    %926 = vmatprep.subr.mxu0 0.0
    %927 = vmatpush1.msra.mxu0 0.0
    %928 = vmatprep.subr.mxu0 0.0
    %929 = vmatpush1.msra.mxu0 0.0
    %930 = vmatprep.subr.mxu0 0.0
    %931 = vmatpush1.msra.mxu0 0.0
    %932 = vmatprep.subr.mxu0 0.0
    %933 = vmatpush1.msra.mxu0 0.0
    %934 = vmatprep.subr.mxu0 0.0
    %935 = vmatpush1.msra.mxu0 0.0
    %936 = vmatprep.subr.mxu0 0.0
    %937 = vmatpush1.msra.mxu0 0.0
    %938 = vmatprep.subr.mxu0 0.0
    %939 = vmatpush1.msra.mxu0 0.0
    %940 = vmatprep.subr.mxu0 0.0
    %941 = vmatpush1.msra.mxu0 0.0
    %942 = vmatprep.subr.mxu0 0.0
    %943 = vmatpush1.msra.mxu0 0.0
    %944 = vmatprep.subr.mxu0 0.0
    %945 = vmatpush1.msra.mxu0 0.0
    %946 = vmatprep.subr.mxu0 0.0
    %947 = vmatpush1.msra.mxu0 0.0
    %948 = vmatprep.subr.mxu0 0.0
    %949 = vmatpush1.msra.mxu0 0.0
    %950 = vmatprep.subr.mxu0 0.0
    %951 = vmatpush1.msra.mxu0 0.0
    %952 = vmatprep.mubr.f32.mxu0 0.0
    %953 = vmatmul.mubr.f32.gmra.mrb[0].mxu0 %v43
    %v954 = vpop.f32.mrb[0].mxu0
    %v955 = vadd.f32 0.0, %v954
    %v956 = vpop.f32.mrb[0].mxu0
    %957 = vmatprep.mubr.f32.mxu0 0.0
    %958 = vmatmul.mubr.f32.gmra.mrb[0].mxu0 %v44
    %v959 = vpop.f32.mrb[0].mxu0
    %v960 = vadd.f32 0.0, %v959
    %v961 = vpop.f32.mrb[0].mxu0
    %962 = vdwg.mxu0
    %964 = vset.pattern.permute.xlu0 32
    %965 = vperm.xlu0 %964, %v653
    %v966 = vpop.permute.xlu0 %965
    %969 = vset.pattern.permute.xlu0 32
    %970 = vperm.xlu0 %969, %v757
    %v971 = vpop.permute.xlu0 %970
    %v973 = vmul.f32 %v966, %v955
    %v974 = vmul.f32 %v971, %v960
    %v975 = vadd.f32 %v870, %v973
    %v976 = vadd.f32 %v871, %v974
    %v977 = vmul.f32 %v975, 1.442695
    %v978 = vpow.pop %v977
    %v979 = vmul.f32 %v976, 1.442695
    %v980 = vpow.pop %v979
    %v981 = vsub.f32 0.0, %v975
    %v982 = vsub.f32 0.0, %v976
    %v983 = vmul.f32 %v981, 1.442695
    %v984 = vpow.pop %v983
    %v985 = vmul.f32 %v982, 1.442695
    %v986 = vpow.pop %v985
    %v987 = vsub.f32 %v978, %v984
    %v988 = vsub.f32 %v980, %v986
    %v989 = vmul.f32 %v987, 0.5
    %v990 = vmul.f32 %v988, 0.5
    %991 = vst [vmem:[#allocation7] sm:$0xff] %v989
    %992 = vst [vmem:[#allocation7 + $0x8] sm:$0xff] %v990
    // Predicated region
    $region22: #{tpu_custom_call.1} parent=1 // pred_check
      _
    $region23: #{tpu_custom_call.1} parent=1 // pred_check_branch
      %994 = sbr.rel (0) target = $region25
    $region24: #{tpu_custom_call.1} parent=1 // pred_region
      %s996 = ssub.s32 256, 256
      %997 = vsyncadd [#allocation4], %s996
      %s998 = sshll.u32 [#allocation7], 4
      %s999 = int_to_ptr.vmem [resolvable:$true] %s998
      %1004 = dma.vmem_to_hbm [thread:$0]  %s999, 256, %s3, [#allocation4], 128, 128, 8
    $region25: #{tpu_custom_call.1} parent=1 // pred_fallthru
      _
    // Predicated region
    $region26: #{tpu_custom_call.1} parent=1 // pred_check
      _
    $region27: #{tpu_custom_call.1} parent=1 // pred_check_branch
      %1006 = sbr.rel (0) target = $region29
    $region28: #{tpu_custom_call.1} parent=1 // pred_region
      %1007 = dma.done [#allocation4], 256
    $region29: #{tpu_custom_call.1} parent=1 // pred_fallthru
      _
    %1008 = vsyncpa [#allocation3], 1
    %1009 = vsyncpa [#allocation6], 1
    %1010 = vsyncpa [#allocation4], 1

</llo_original>
